<compile_context>
chip_gen: v5e
topology: v5e:2x2
jax: 0.10.0
libtpu: 0.0.40
codegen_flags: <defaults>
</compile_context>

<pallas_src>
import numpy as np
import jax
import jax.numpy as jnp
from jax.experimental import pallas as pl
from jax.experimental.pallas import tpu as pltpu

K = 4                     # kernel_size of every ConvTranspose2d in the module
BN_EPS = 1e-5


# ------------------------------ kernel helpers --------------------------------

def _deconv(x, l_ref, t_ref):
    """One ConvTranspose2d layer:  sum_ky (L_ky @ X) @ T_ky.

    x     : (N*H, W*Cin)        f32 activation (lane-dense 2-D layout)
    l_ref : (K*N*Ho, N*H)       bf16 0/1 row-gather matrix (all ky stacked)
    t_ref : (K, W*Cin, Wo*Cout) bf16 block-Toeplitz weight matrices
    returns (N*Ho, Wo*Cout) f32
    """
    xb = x.astype(jnp.bfloat16)
    # One MXU matmul realizes dilation + padding + kernel-row gather for every ky and
    # every batch element at once (batch folded into rows; no per-n loop).
    xg = jnp.dot(l_ref[...], xb, preferred_element_type=jnp.float32)
    xg = xg.astype(jnp.bfloat16)           # exact: gathered values are already bf16
    rows = xg.shape[0] // K
    acc = None
    for ky in range(K):                    # 4 lane-dense MXU matmuls, f32 accumulation
        part = jnp.dot(xg[ky * rows:(ky + 1) * rows, :], t_ref[ky],
                       preferred_element_type=jnp.float32)
        acc = part if acc is None else acc + part
    return acc


def _bn_relu(a, p_ref, gamma_ref, beta_ref):
    """Training-mode BatchNorm2d (biased batch variance, two-pass) + ReLU.

    a: (N*Ho, Wo*C) f32 with columns ordered (wo, c).  p_ref is a (Wo*C, Wo*C)
    0/(1/count) matrix doing the per-channel reduce over wo AND the broadcast back,
    so no in-kernel reshapes are needed.
    """
    s1 = jnp.sum(a, axis=0, keepdims=True)                                # (1, Wo*C)
    mean = jnp.dot(s1, p_ref[...], preferred_element_type=jnp.float32)    # per-channel mean
    xc = a - mean
    s2 = jnp.sum(xc * xc, axis=0, keepdims=True)                          # two-pass variance
    var = jnp.dot(s2, p_ref[...], preferred_element_type=jnp.float32)
    y = xc * jax.lax.rsqrt(var + BN_EPS) * gamma_ref[...] + beta_ref[...]
    return jnp.maximum(y, 0.0)


# --------------------------------- kernel -------------------------------------

def _generator_kernel(z_ref,
                      l1_ref, t1_ref, p1_ref, g1_ref, b1_ref,
                      l2_ref, t2_ref, p2_ref, g2_ref, b2_ref,
                      l3_ref, t3_ref, p3_ref, g3_ref, b3_ref,
                      l4_ref, t4_ref, bias4_ref,
                      o_ref):
    # TODO(synk): on v7x, shard the batch across the two TensorCores (core_map + a
    # shared-memory BN reduction); this grid-less call runs on a single TensorCore.
    x = _bn_relu(_deconv(z_ref[...], l1_ref, t1_ref), p1_ref, g1_ref, b1_ref)  # (N*4,  4*4ngf)
    x = _bn_relu(_deconv(x, l2_ref, t2_ref), p2_ref, g2_ref, b2_ref)           # (N*8,  8*2ngf)
    x = _bn_relu(_deconv(x, l3_ref, t3_ref), p3_ref, g3_ref, b3_ref)           # (N*16, 16*ngf)
    o_ref[...] = jnp.tanh(_deconv(x, l4_ref, t4_ref) + bias4_ref[...])         # (N*32, 32*ncp)


# ------------------------------ host-side builders -----------------------------

def _deconv_mats(wt, stride, padding, H, W, N, cout_pad=None):
    """Build the 0/1 row-gather matrix L_cat and block-Toeplitz weights T for one
    ConvTranspose2d (wt: (Cin, Cout, K, K)) acting on an (N, H, W, Cin) activation
    stored as (N*H, W*Cin).  Returns (L_cat bf16, T bf16, Ho, Wo)."""
    Cin, Cout = wt.shape[0], wt.shape[1]
    if cout_pad is not None and cout_pad > Cout:
        wt = jnp.pad(wt, ((0, 0), (0, cout_pad - Cout), (0, 0), (0, 0)))
        Cout = cout_pad
    pad = K - 1 - padding                         # equivalent forward-conv padding
    Ho = (H - 1) * stride + K - 2 * padding
    Wo = (W - 1) * stride + K - 2 * padding

    # L_cat[(ky,n,ho), (n,h)] = 1  iff  ho + ky - pad == h*stride  (0/1 -> exact in bf16).
    L = np.zeros((K, N, Ho, N, H), np.float32)
    for ky in range(K):
        for ho in range(Ho):
            h, rem = divmod(ho + ky - pad, stride)
            if rem == 0 and 0 <= h < H:
                for n in range(N):
                    L[ky, n, ho, n, h] = 1.0
    L = jnp.asarray(L.reshape(K * N * Ho, N * H), jnp.bfloat16)

    # Flipped forward-conv weight g[ky, kx, cin, cout] (channels swapped, spatial flip).
    g = jnp.transpose(wt, (2, 3, 0, 1))[::-1, ::-1]
    # T[ky][(w, c), (wo, co)] = g[ky, kx, c, co]  with  kx = pad + w*stride - wo.
    kx = pad + stride * np.arange(W)[:, None] - np.arange(Wo)[None, :]        # (W, Wo)
    valid = ((kx >= 0) & (kx < K)).astype(np.float32)
    t = g[:, np.clip(kx, 0, K - 1)]                                           # (K, W, Wo, Cin, Cout)
    t = t * jnp.asarray(valid)[None, :, :, None, None]
    t = jnp.transpose(t, (0, 1, 3, 2, 4)).reshape(K, W * Cin, Wo * Cout)
    return L, t.astype(jnp.bfloat16), Ho, Wo


def _bn_mats(gamma, beta, Wo, count):
    """Per-channel reduce+broadcast matrix (with 1/count folded in), plus gamma/beta
    tiled to the (wo, c)-interleaved lane layout."""
    C = gamma.shape[0]
    P = np.zeros((Wo, C, Wo, C), np.float32)
    for c in range(C):
        P[:, c, :, c] = 1.0 / count
    P = jnp.asarray(P.reshape(Wo * C, Wo * C))
    g_t = jnp.tile(gamma.reshape(1, C).astype(jnp.float32), (1, Wo))
    b_t = jnp.tile(beta.reshape(1, C).astype(jnp.float32), (1, Wo))
    return P, g_t, b_t


# -------------------------------- host wrapper ---------------------------------

def generator_forward(z_nchw, params):
    """z: (N, nz, 1, 1) -> image (N, nc, 32, 32), matching the PyTorch Generator
    forward pass (BatchNorm2d in training mode, i.e. batch statistics)."""
    N, nz = z_nchw.shape[0], z_nchw.shape[1]
    nc = params["w4"].shape[1]
    ncp = -(-nc // 4) * 4                  # pad output channels -> 128-lane final store

    z2 = z_nchw.reshape(N, nz).astype(jnp.float32)

    # Fixed architecture spatial chain: 1 -> 4 -> 8 -> 16 -> 32.
    l1, t1, hh1, ww1 = _deconv_mats(params["w1"], 1, 0, 1, 1, N)
    l2, t2, hh2, ww2 = _deconv_mats(params["w2"], 2, 1, hh1, ww1, N)
    l3, t3, hh3, ww3 = _deconv_mats(params["w3"], 2, 1, hh2, ww2, N)
    l4, t4, hh4, ww4 = _deconv_mats(params["w4"], 2, 1, hh3, ww3, N, cout_pad=ncp)

    p1, g1t, b1t = _bn_mats(params["g1"], params["b1"], ww1, N * hh1 * ww1)
    p2, g2t, b2t = _bn_mats(params["g2"], params["b2"], ww2, N * hh2 * ww2)
    p3, g3t, b3t = _bn_mats(params["g3"], params["b3"], ww3, N * hh3 * ww3)
    bias4_t = jnp.tile(
        jnp.pad(params["bias4"].reshape(1, nc).astype(jnp.float32),
                ((0, 0), (0, ncp - nc))), (1, ww4))

    out2d = pl.pallas_call(
        _generator_kernel,
        out_shape=jax.ShapeDtypeStruct((N * hh4, ww4 * ncp), jnp.float32),
        in_specs=[pl.BlockSpec(memory_space=pltpu.MemorySpace.VMEM)] * 19,
        out_specs=pl.BlockSpec(memory_space=pltpu.MemorySpace.VMEM),
        # Total operand + intermediate footprint is well under 2 MiB at this scale;
        # re-derive this limit if N/ngf are scaled up (v7x has 64 MiB VMEM per core).
        compiler_params=pltpu.CompilerParams(vmem_limit_bytes=32 * 1024 * 1024),
    )(z2,
      l1, t1, p1, g1t, b1t,
      l2, t2, p2, g2t, b2t,
      l3, t3, p3, g3t, b3t,
      l4, t4, bias4_t)

    img = out2d.reshape(N, hh4, ww4, ncp)[:, :, :, :nc]       # NHWC
    return jnp.transpose(img, (0, 3, 1, 2))                   # NCHW


# ----------------------------- pure-JAX reference ------------------------------

def reference_forward(z_nchw, params):
    """XLA reference of the same forward pass (for validation only)."""
    def deconv(x, wt, stride, padding):
        g = jnp.transpose(wt, (2, 3, 0, 1))[::-1, ::-1]
        pad = K - 1 - padding
        return jax.lax.conv_general_dilated(
            x, g, window_strides=(1, 1),
            padding=((pad, pad), (pad, pad)),
            lhs_dilation=(stride, stride),
            dimension_numbers=('NHWC', 'HWIO', 'NHWC'),
            precision=jax.lax.Precision.HIGHEST)

    def bn_relu(x, gamma, beta):
        m = jnp.mean(x, axis=(0, 1, 2), keepdims=True)
        v = jnp.var(x, axis=(0, 1, 2), keepdims=True)
        return jnp.maximum((x - m) / jnp.sqrt(v + BN_EPS) * gamma + beta, 0.0)

    x = jnp.transpose(z_nchw, (0, 2, 3, 1)).astype(jnp.float32)
    x = bn_relu(deconv(x, params["w1"], 1, 0), params["g1"], params["b1"])
    x = bn_relu(deconv(x, params["w2"], 2, 1), params["g2"], params["b2"])
    x = bn_relu(deconv(x, params["w3"], 2, 1), params["g3"], params["b3"])
    x = jnp.tanh(deconv(x, params["w4"], 2, 1) + params["bias4"])
    return jnp.transpose(x, (0, 3, 1, 2))


if __name__ == "__main__":
    nz, ngf, nc, N = 16, 8, 3, 2
    key = jax.random.PRNGKey(0)
    k = jax.random.split(key, 6)
    params = {
        # ConvTranspose2d weights: (in_channels, out_channels, K, K), DCGAN-style init.
        "w1": 0.02 * jax.random.normal(k[0], (nz, ngf * 4, K, K), jnp.float32),
        "g1": jnp.ones((ngf * 4,), jnp.float32),
        "b1": jnp.zeros((ngf * 4,), jnp.float32),
        "w2": 0.02 * jax.random.normal(k[1], (ngf * 4, ngf * 2, K, K), jnp.float32),
        "g2": jnp.ones((ngf * 2,), jnp.float32),
        "b2": jnp.zeros((ngf * 2,), jnp.float32),
        "w3": 0.02 * jax.random.normal(k[2], (ngf * 2, ngf, K, K), jnp.float32),
        "g3": jnp.ones((ngf,), jnp.float32),
        "b3": jnp.zeros((ngf,), jnp.float32),
        "w4": 0.02 * jax.random.normal(k[3], (ngf, nc, K, K), jnp.float32),
        "bias4": 0.01 * jax.random.normal(k[4], (nc,), jnp.float32),
    }
    z = jax.random.normal(k[5], (N, nz, 1, 1), jnp.float32)

    out = jax.block_until_ready(jax.jit(generator_forward)(z, params))
    assert out.shape == (N, nc, 32, 32), out.shape
    assert bool(jnp.all(jnp.isfinite(out)))

    ref = jax.block_until_ready(jax.jit(reference_forward)(z, params))
    assert bool(jnp.allclose(out, ref, atol=2e-2, rtol=2e-2)), \
        float(jnp.max(jnp.abs(out - ref)))
    print("KERNEL_OK")
</pallas_src>

<mosaic_0001>
module attributes {stable_mosaic.version = 11 : i64} {
  func.func @_generator_kernel(%arg0: memref<2x16xf32, #tpu.memory_space<vmem>>, %arg1: memref<32x2xbf16, #tpu.memory_space<vmem>>, %arg2: memref<4x16x128xbf16, #tpu.memory_space<vmem>>, %arg3: memref<128x128xf32, #tpu.memory_space<vmem>>, %arg4: memref<1x128xf32, #tpu.memory_space<vmem>>, %arg5: memref<1x128xf32, #tpu.memory_space<vmem>>, %arg6: memref<64x8xbf16, #tpu.memory_space<vmem>>, %arg7: memref<4x128x128xbf16, #tpu.memory_space<vmem>>, %arg8: memref<128x128xf32, #tpu.memory_space<vmem>>, %arg9: memref<1x128xf32, #tpu.memory_space<vmem>>, %arg10: memref<1x128xf32, #tpu.memory_space<vmem>>, %arg11: memref<128x16xbf16, #tpu.memory_space<vmem>>, %arg12: memref<4x128x128xbf16, #tpu.memory_space<vmem>>, %arg13: memref<128x128xf32, #tpu.memory_space<vmem>>, %arg14: memref<1x128xf32, #tpu.memory_space<vmem>>, %arg15: memref<1x128xf32, #tpu.memory_space<vmem>>, %arg16: memref<256x32xbf16, #tpu.memory_space<vmem>>, %arg17: memref<4x128x128xbf16, #tpu.memory_space<vmem>>, %arg18: memref<1x128xf32, #tpu.memory_space<vmem>>, %arg19: memref<64x128xf32, #tpu.memory_space<vmem>>) attributes {dimension_semantics = [], scalar_prefetch = 0 : i64, scratch_operands = 0 : i64, tpu.core_type = #tpu.core_type<tc>} {
    %c0 = arith.constant 0 : index
    %c0_0 = arith.constant 0 : index
    %0 = vector.load %arg0[%c0, %c0_0] : memref<2x16xf32, #tpu.memory_space<vmem>>, vector<2x16xf32>
    %1 = arith.truncf %0 : vector<2x16xf32> to vector<2x16xbf16>
    %c0_1 = arith.constant 0 : index
    %c0_2 = arith.constant 0 : index
    %2 = vector.load %arg1[%c0_1, %c0_2] : memref<32x2xbf16, #tpu.memory_space<vmem>>, vector<32x2xbf16>
    %cst = arith.constant dense<0.000000e+00> : vector<32x16xf32>
    %3 = tpu.matmul %2, %1, %cst {dimension_numbers = #tpu.dot_dimension_numbers<[1], [0], [0], [1], [0, 0, 1, 1], [], []>} : vector<32x2xbf16>, vector<2x16xbf16>, vector<32x16xf32> -> vector<32x16xf32>
    %4 = arith.truncf %3 : vector<32x16xf32> to vector<32x16xbf16>
    %5 = vector.extract_strided_slice %4 {offsets = [0, 0], sizes = [8, 16], strides = [1, 1]} : vector<32x16xbf16> to vector<8x16xbf16>
    %c0_3 = arith.constant 0 : index
    %c0_4 = arith.constant 0 : index
    %c0_5 = arith.constant 0 : index
    %6 = vector.load %arg2[%c0_3, %c0_4, %c0_5] : memref<4x16x128xbf16, #tpu.memory_space<vmem>>, vector<1x16x128xbf16>
    %7 = vector.shape_cast %6 : vector<1x16x128xbf16> to vector<16x128xbf16>
    %cst_6 = arith.constant dense<0.000000e+00> : vector<8x128xf32>
    %8 = tpu.matmul %5, %7, %cst_6 {dimension_numbers = #tpu.dot_dimension_numbers<[1], [0], [0], [1], [0, 0, 1, 1], [], []>} : vector<8x16xbf16>, vector<16x128xbf16>, vector<8x128xf32> -> vector<8x128xf32>
    %9 = vector.extract_strided_slice %4 {offsets = [8, 0], sizes = [8, 16], strides = [1, 1]} : vector<32x16xbf16> to vector<8x16xbf16>
    %c1 = arith.constant 1 : index
    %c0_7 = arith.constant 0 : index
    %c0_8 = arith.constant 0 : index
    %10 = vector.load %arg2[%c1, %c0_7, %c0_8] : memref<4x16x128xbf16, #tpu.memory_space<vmem>>, vector<1x16x128xbf16>
    %11 = vector.shape_cast %10 : vector<1x16x128xbf16> to vector<16x128xbf16>
    %cst_9 = arith.constant dense<0.000000e+00> : vector<8x128xf32>
    %12 = tpu.matmul %9, %11, %cst_9 {dimension_numbers = #tpu.dot_dimension_numbers<[1], [0], [0], [1], [0, 0, 1, 1], [], []>} : vector<8x16xbf16>, vector<16x128xbf16>, vector<8x128xf32> -> vector<8x128xf32>
    %13 = arith.addf %8, %12 : vector<8x128xf32>
    %14 = vector.extract_strided_slice %4 {offsets = [16, 0], sizes = [8, 16], strides = [1, 1]} : vector<32x16xbf16> to vector<8x16xbf16>
    %c2 = arith.constant 2 : index
    %c0_10 = arith.constant 0 : index
    %c0_11 = arith.constant 0 : index
    %15 = vector.load %arg2[%c2, %c0_10, %c0_11] : memref<4x16x128xbf16, #tpu.memory_space<vmem>>, vector<1x16x128xbf16>
    %16 = vector.shape_cast %15 : vector<1x16x128xbf16> to vector<16x128xbf16>
    %cst_12 = arith.constant dense<0.000000e+00> : vector<8x128xf32>
    %17 = tpu.matmul %14, %16, %cst_12 {dimension_numbers = #tpu.dot_dimension_numbers<[1], [0], [0], [1], [0, 0, 1, 1], [], []>} : vector<8x16xbf16>, vector<16x128xbf16>, vector<8x128xf32> -> vector<8x128xf32>
    %18 = arith.addf %13, %17 : vector<8x128xf32>
    %19 = vector.extract_strided_slice %4 {offsets = [24, 0], sizes = [8, 16], strides = [1, 1]} : vector<32x16xbf16> to vector<8x16xbf16>
    %c3 = arith.constant 3 : index
    %c0_13 = arith.constant 0 : index
    %c0_14 = arith.constant 0 : index
    %20 = vector.load %arg2[%c3, %c0_13, %c0_14] : memref<4x16x128xbf16, #tpu.memory_space<vmem>>, vector<1x16x128xbf16>
    %21 = vector.shape_cast %20 : vector<1x16x128xbf16> to vector<16x128xbf16>
    %cst_15 = arith.constant dense<0.000000e+00> : vector<8x128xf32>
    %22 = tpu.matmul %19, %21, %cst_15 {dimension_numbers = #tpu.dot_dimension_numbers<[1], [0], [0], [1], [0, 0, 1, 1], [], []>} : vector<8x16xbf16>, vector<16x128xbf16>, vector<8x128xf32> -> vector<8x128xf32>
    %23 = arith.addf %18, %22 : vector<8x128xf32>
    %cst_16 = arith.constant dense<0.000000e+00> : vector<128xf32>
    %24 = vector.multi_reduction <add>, %23, %cst_16 [0] : vector<8x128xf32> to vector<128xf32>
    %25 = vector.shape_cast %24 : vector<128xf32> to vector<1x128xf32>
    %c0_17 = arith.constant 0 : index
    %c0_18 = arith.constant 0 : index
    %26 = vector.load %arg3[%c0_17, %c0_18] : memref<128x128xf32, #tpu.memory_space<vmem>>, vector<128x128xf32>
    %cst_19 = arith.constant dense<0.000000e+00> : vector<1x128xf32>
    %27 = tpu.matmul %25, %26, %cst_19 {dimension_numbers = #tpu.dot_dimension_numbers<[1], [0], [0], [1], [0, 0, 1, 1], [], []>} : vector<1x128xf32>, vector<128x128xf32>, vector<1x128xf32> -> vector<1x128xf32>
    %28 = vector.broadcast %27 : vector<1x128xf32> to vector<8x128xf32>
    %29 = arith.subf %23, %28 : vector<8x128xf32>
    %30 = arith.mulf %29, %29 : vector<8x128xf32>
    %cst_20 = arith.constant dense<0.000000e+00> : vector<128xf32>
    %31 = vector.multi_reduction <add>, %30, %cst_20 [0] : vector<8x128xf32> to vector<128xf32>
    %32 = vector.shape_cast %31 : vector<128xf32> to vector<1x128xf32>
    %c0_21 = arith.constant 0 : index
    %c0_22 = arith.constant 0 : index
    %33 = vector.load %arg3[%c0_21, %c0_22] : memref<128x128xf32, #tpu.memory_space<vmem>>, vector<128x128xf32>
    %cst_23 = arith.constant dense<0.000000e+00> : vector<1x128xf32>
    %34 = tpu.matmul %32, %33, %cst_23 {dimension_numbers = #tpu.dot_dimension_numbers<[1], [0], [0], [1], [0, 0, 1, 1], [], []>} : vector<1x128xf32>, vector<128x128xf32>, vector<1x128xf32> -> vector<1x128xf32>
    %cst_24 = arith.constant 9.99999974E-6 : f32
    %35 = vector.broadcast %cst_24 : f32 to vector<1x128xf32>
    %36 = arith.addf %34, %35 : vector<1x128xf32>
    %37 = math.rsqrt %36 : vector<1x128xf32>
    %38 = vector.broadcast %37 : vector<1x128xf32> to vector<8x128xf32>
    %39 = arith.mulf %29, %38 : vector<8x128xf32>
    %c0_25 = arith.constant 0 : index
    %c0_26 = arith.constant 0 : index
    %40 = vector.load %arg4[%c0_25, %c0_26] : memref<1x128xf32, #tpu.memory_space<vmem>>, vector<1x128xf32>
    %41 = vector.broadcast %40 : vector<1x128xf32> to vector<8x128xf32>
    %42 = arith.mulf %39, %41 : vector<8x128xf32>
    %c0_27 = arith.constant 0 : index
    %c0_28 = arith.constant 0 : index
    %43 = vector.load %arg5[%c0_27, %c0_28] : memref<1x128xf32, #tpu.memory_space<vmem>>, vector<1x128xf32>
    %44 = vector.broadcast %43 : vector<1x128xf32> to vector<8x128xf32>
    %45 = arith.addf %42, %44 : vector<8x128xf32>
    %cst_29 = arith.constant 0.000000e+00 : f32
    %46 = vector.broadcast %cst_29 : f32 to vector<8x128xf32>
    %47 = arith.maximumf %45, %46 : vector<8x128xf32>
    %48 = arith.truncf %47 : vector<8x128xf32> to vector<8x128xbf16>
    %c0_30 = arith.constant 0 : index
    %c0_31 = arith.constant 0 : index
    %49 = vector.load %arg6[%c0_30, %c0_31] : memref<64x8xbf16, #tpu.memory_space<vmem>>, vector<64x8xbf16>
    %cst_32 = arith.constant dense<0.000000e+00> : vector<64x128xf32>
    %50 = tpu.matmul %49, %48, %cst_32 {dimension_numbers = #tpu.dot_dimension_numbers<[1], [0], [0], [1], [0, 0, 1, 1], [], []>} : vector<64x8xbf16>, vector<8x128xbf16>, vector<64x128xf32> -> vector<64x128xf32>
    %51 = arith.truncf %50 : vector<64x128xf32> to vector<64x128xbf16>
    %52 = vector.extract_strided_slice %51 {offsets = [0, 0], sizes = [16, 128], strides = [1, 1]} : vector<64x128xbf16> to vector<16x128xbf16>
    %c0_33 = arith.constant 0 : index
    %c0_34 = arith.constant 0 : index
    %c0_35 = arith.constant 0 : index
    %53 = vector.load %arg7[%c0_33, %c0_34, %c0_35] : memref<4x128x128xbf16, #tpu.memory_space<vmem>>, vector<1x128x128xbf16>
    %54 = vector.shape_cast %53 : vector<1x128x128xbf16> to vector<128x128xbf16>
    %cst_36 = arith.constant dense<0.000000e+00> : vector<16x128xf32>
    %55 = tpu.matmul %52, %54, %cst_36 {dimension_numbers = #tpu.dot_dimension_numbers<[1], [0], [0], [1], [0, 0, 1, 1], [], []>} : vector<16x128xbf16>, vector<128x128xbf16>, vector<16x128xf32> -> vector<16x128xf32>
    %56 = vector.extract_strided_slice %51 {offsets = [16, 0], sizes = [16, 128], strides = [1, 1]} : vector<64x128xbf16> to vector<16x128xbf16>
    %c1_37 = arith.constant 1 : index
    %c0_38 = arith.constant 0 : index
    %c0_39 = arith.constant 0 : index
    %57 = vector.load %arg7[%c1_37, %c0_38, %c0_39] : memref<4x128x128xbf16, #tpu.memory_space<vmem>>, vector<1x128x128xbf16>
    %58 = vector.shape_cast %57 : vector<1x128x128xbf16> to vector<128x128xbf16>
    %cst_40 = arith.constant dense<0.000000e+00> : vector<16x128xf32>
    %59 = tpu.matmul %56, %58, %cst_40 {dimension_numbers = #tpu.dot_dimension_numbers<[1], [0], [0], [1], [0, 0, 1, 1], [], []>} : vector<16x128xbf16>, vector<128x128xbf16>, vector<16x128xf32> -> vector<16x128xf32>
    %60 = arith.addf %55, %59 : vector<16x128xf32>
    %61 = vector.extract_strided_slice %51 {offsets = [32, 0], sizes = [16, 128], strides = [1, 1]} : vector<64x128xbf16> to vector<16x128xbf16>
    %c2_41 = arith.constant 2 : index
    %c0_42 = arith.constant 0 : index
    %c0_43 = arith.constant 0 : index
    %62 = vector.load %arg7[%c2_41, %c0_42, %c0_43] : memref<4x128x128xbf16, #tpu.memory_space<vmem>>, vector<1x128x128xbf16>
    %63 = vector.shape_cast %62 : vector<1x128x128xbf16> to vector<128x128xbf16>
    %cst_44 = arith.constant dense<0.000000e+00> : vector<16x128xf32>
    %64 = tpu.matmul %61, %63, %cst_44 {dimension_numbers = #tpu.dot_dimension_numbers<[1], [0], [0], [1], [0, 0, 1, 1], [], []>} : vector<16x128xbf16>, vector<128x128xbf16>, vector<16x128xf32> -> vector<16x128xf32>
    %65 = arith.addf %60, %64 : vector<16x128xf32>
    %66 = vector.extract_strided_slice %51 {offsets = [48, 0], sizes = [16, 128], strides = [1, 1]} : vector<64x128xbf16> to vector<16x128xbf16>
    %c3_45 = arith.constant 3 : index
    %c0_46 = arith.constant 0 : index
    %c0_47 = arith.constant 0 : index
    %67 = vector.load %arg7[%c3_45, %c0_46, %c0_47] : memref<4x128x128xbf16, #tpu.memory_space<vmem>>, vector<1x128x128xbf16>
    %68 = vector.shape_cast %67 : vector<1x128x128xbf16> to vector<128x128xbf16>
    %cst_48 = arith.constant dense<0.000000e+00> : vector<16x128xf32>
    %69 = tpu.matmul %66, %68, %cst_48 {dimension_numbers = #tpu.dot_dimension_numbers<[1], [0], [0], [1], [0, 0, 1, 1], [], []>} : vector<16x128xbf16>, vector<128x128xbf16>, vector<16x128xf32> -> vector<16x128xf32>
    %70 = arith.addf %65, %69 : vector<16x128xf32>
    %cst_49 = arith.constant dense<0.000000e+00> : vector<128xf32>
    %71 = vector.multi_reduction <add>, %70, %cst_49 [0] : vector<16x128xf32> to vector<128xf32>
    %72 = vector.shape_cast %71 : vector<128xf32> to vector<1x128xf32>
    %c0_50 = arith.constant 0 : index
    %c0_51 = arith.constant 0 : index
    %73 = vector.load %arg8[%c0_50, %c0_51] : memref<128x128xf32, #tpu.memory_space<vmem>>, vector<128x128xf32>
    %cst_52 = arith.constant dense<0.000000e+00> : vector<1x128xf32>
    %74 = tpu.matmul %72, %73, %cst_52 {dimension_numbers = #tpu.dot_dimension_numbers<[1], [0], [0], [1], [0, 0, 1, 1], [], []>} : vector<1x128xf32>, vector<128x128xf32>, vector<1x128xf32> -> vector<1x128xf32>
    %75 = vector.broadcast %74 : vector<1x128xf32> to vector<16x128xf32>
    %76 = arith.subf %70, %75 : vector<16x128xf32>
    %77 = arith.mulf %76, %76 : vector<16x128xf32>
    %cst_53 = arith.constant dense<0.000000e+00> : vector<128xf32>
    %78 = vector.multi_reduction <add>, %77, %cst_53 [0] : vector<16x128xf32> to vector<128xf32>
    %79 = vector.shape_cast %78 : vector<128xf32> to vector<1x128xf32>
    %c0_54 = arith.constant 0 : index
    %c0_55 = arith.constant 0 : index
    %80 = vector.load %arg8[%c0_54, %c0_55] : memref<128x128xf32, #tpu.memory_space<vmem>>, vector<128x128xf32>
    %cst_56 = arith.constant dense<0.000000e+00> : vector<1x128xf32>
    %81 = tpu.matmul %79, %80, %cst_56 {dimension_numbers = #tpu.dot_dimension_numbers<[1], [0], [0], [1], [0, 0, 1, 1], [], []>} : vector<1x128xf32>, vector<128x128xf32>, vector<1x128xf32> -> vector<1x128xf32>
    %cst_57 = arith.constant 9.99999974E-6 : f32
    %82 = vector.broadcast %cst_57 : f32 to vector<1x128xf32>
    %83 = arith.addf %81, %82 : vector<1x128xf32>
    %84 = math.rsqrt %83 : vector<1x128xf32>
    %85 = vector.broadcast %84 : vector<1x128xf32> to vector<16x128xf32>
    %86 = arith.mulf %76, %85 : vector<16x128xf32>
    %c0_58 = arith.constant 0 : index
    %c0_59 = arith.constant 0 : index
    %87 = vector.load %arg9[%c0_58, %c0_59] : memref<1x128xf32, #tpu.memory_space<vmem>>, vector<1x128xf32>
    %88 = vector.broadcast %87 : vector<1x128xf32> to vector<16x128xf32>
    %89 = arith.mulf %86, %88 : vector<16x128xf32>
    %c0_60 = arith.constant 0 : index
    %c0_61 = arith.constant 0 : index
    %90 = vector.load %arg10[%c0_60, %c0_61] : memref<1x128xf32, #tpu.memory_space<vmem>>, vector<1x128xf32>
    %91 = vector.broadcast %90 : vector<1x128xf32> to vector<16x128xf32>
    %92 = arith.addf %89, %91 : vector<16x128xf32>
    %cst_62 = arith.constant 0.000000e+00 : f32
    %93 = vector.broadcast %cst_62 : f32 to vector<16x128xf32>
    %94 = arith.maximumf %92, %93 : vector<16x128xf32>
    %95 = arith.truncf %94 : vector<16x128xf32> to vector<16x128xbf16>
    %c0_63 = arith.constant 0 : index
    %c0_64 = arith.constant 0 : index
    %96 = vector.load %arg11[%c0_63, %c0_64] : memref<128x16xbf16, #tpu.memory_space<vmem>>, vector<128x16xbf16>
    %cst_65 = arith.constant dense<0.000000e+00> : vector<128x128xf32>
    %97 = tpu.matmul %96, %95, %cst_65 {dimension_numbers = #tpu.dot_dimension_numbers<[1], [0], [0], [1], [0, 0, 1, 1], [], []>} : vector<128x16xbf16>, vector<16x128xbf16>, vector<128x128xf32> -> vector<128x128xf32>
    %98 = arith.truncf %97 : vector<128x128xf32> to vector<128x128xbf16>
    %99 = vector.extract_strided_slice %98 {offsets = [0, 0], sizes = [32, 128], strides = [1, 1]} : vector<128x128xbf16> to vector<32x128xbf16>
    %c0_66 = arith.constant 0 : index
    %c0_67 = arith.constant 0 : index
    %c0_68 = arith.constant 0 : index
    %100 = vector.load %arg12[%c0_66, %c0_67, %c0_68] : memref<4x128x128xbf16, #tpu.memory_space<vmem>>, vector<1x128x128xbf16>
    %101 = vector.shape_cast %100 : vector<1x128x128xbf16> to vector<128x128xbf16>
    %cst_69 = arith.constant dense<0.000000e+00> : vector<32x128xf32>
    %102 = tpu.matmul %99, %101, %cst_69 {dimension_numbers = #tpu.dot_dimension_numbers<[1], [0], [0], [1], [0, 0, 1, 1], [], []>} : vector<32x128xbf16>, vector<128x128xbf16>, vector<32x128xf32> -> vector<32x128xf32>
    %103 = vector.extract_strided_slice %98 {offsets = [32, 0], sizes = [32, 128], strides = [1, 1]} : vector<128x128xbf16> to vector<32x128xbf16>
    %c1_70 = arith.constant 1 : index
    %c0_71 = arith.constant 0 : index
    %c0_72 = arith.constant 0 : index
    %104 = vector.load %arg12[%c1_70, %c0_71, %c0_72] : memref<4x128x128xbf16, #tpu.memory_space<vmem>>, vector<1x128x128xbf16>
    %105 = vector.shape_cast %104 : vector<1x128x128xbf16> to vector<128x128xbf16>
    %cst_73 = arith.constant dense<0.000000e+00> : vector<32x128xf32>
    %106 = tpu.matmul %103, %105, %cst_73 {dimension_numbers = #tpu.dot_dimension_numbers<[1], [0], [0], [1], [0, 0, 1, 1], [], []>} : vector<32x128xbf16>, vector<128x128xbf16>, vector<32x128xf32> -> vector<32x128xf32>
    %107 = arith.addf %102, %106 : vector<32x128xf32>
    %108 = vector.extract_strided_slice %98 {offsets = [64, 0], sizes = [32, 128], strides = [1, 1]} : vector<128x128xbf16> to vector<32x128xbf16>
    %c2_74 = arith.constant 2 : index
    %c0_75 = arith.constant 0 : index
    %c0_76 = arith.constant 0 : index
    %109 = vector.load %arg12[%c2_74, %c0_75, %c0_76] : memref<4x128x128xbf16, #tpu.memory_space<vmem>>, vector<1x128x128xbf16>
    %110 = vector.shape_cast %109 : vector<1x128x128xbf16> to vector<128x128xbf16>
    %cst_77 = arith.constant dense<0.000000e+00> : vector<32x128xf32>
    %111 = tpu.matmul %108, %110, %cst_77 {dimension_numbers = #tpu.dot_dimension_numbers<[1], [0], [0], [1], [0, 0, 1, 1], [], []>} : vector<32x128xbf16>, vector<128x128xbf16>, vector<32x128xf32> -> vector<32x128xf32>
    %112 = arith.addf %107, %111 : vector<32x128xf32>
    %113 = vector.extract_strided_slice %98 {offsets = [96, 0], sizes = [32, 128], strides = [1, 1]} : vector<128x128xbf16> to vector<32x128xbf16>
    %c3_78 = arith.constant 3 : index
    %c0_79 = arith.constant 0 : index
    %c0_80 = arith.constant 0 : index
    %114 = vector.load %arg12[%c3_78, %c0_79, %c0_80] : memref<4x128x128xbf16, #tpu.memory_space<vmem>>, vector<1x128x128xbf16>
    %115 = vector.shape_cast %114 : vector<1x128x128xbf16> to vector<128x128xbf16>
    %cst_81 = arith.constant dense<0.000000e+00> : vector<32x128xf32>
    %116 = tpu.matmul %113, %115, %cst_81 {dimension_numbers = #tpu.dot_dimension_numbers<[1], [0], [0], [1], [0, 0, 1, 1], [], []>} : vector<32x128xbf16>, vector<128x128xbf16>, vector<32x128xf32> -> vector<32x128xf32>
    %117 = arith.addf %112, %116 : vector<32x128xf32>
    %cst_82 = arith.constant dense<0.000000e+00> : vector<128xf32>
    %118 = vector.multi_reduction <add>, %117, %cst_82 [0] : vector<32x128xf32> to vector<128xf32>
    %119 = vector.shape_cast %118 : vector<128xf32> to vector<1x128xf32>
    %c0_83 = arith.constant 0 : index
    %c0_84 = arith.constant 0 : index
    %120 = vector.load %arg13[%c0_83, %c0_84] : memref<128x128xf32, #tpu.memory_space<vmem>>, vector<128x128xf32>
    %cst_85 = arith.constant dense<0.000000e+00> : vector<1x128xf32>
    %121 = tpu.matmul %119, %120, %cst_85 {dimension_numbers = #tpu.dot_dimension_numbers<[1], [0], [0], [1], [0, 0, 1, 1], [], []>} : vector<1x128xf32>, vector<128x128xf32>, vector<1x128xf32> -> vector<1x128xf32>
    %122 = vector.broadcast %121 : vector<1x128xf32> to vector<32x128xf32>
    %123 = arith.subf %117, %122 : vector<32x128xf32>
    %124 = arith.mulf %123, %123 : vector<32x128xf32>
    %cst_86 = arith.constant dense<0.000000e+00> : vector<128xf32>
    %125 = vector.multi_reduction <add>, %124, %cst_86 [0] : vector<32x128xf32> to vector<128xf32>
    %126 = vector.shape_cast %125 : vector<128xf32> to vector<1x128xf32>
    %c0_87 = arith.constant 0 : index
    %c0_88 = arith.constant 0 : index
    %127 = vector.load %arg13[%c0_87, %c0_88] : memref<128x128xf32, #tpu.memory_space<vmem>>, vector<128x128xf32>
    %cst_89 = arith.constant dense<0.000000e+00> : vector<1x128xf32>
    %128 = tpu.matmul %126, %127, %cst_89 {dimension_numbers = #tpu.dot_dimension_numbers<[1], [0], [0], [1], [0, 0, 1, 1], [], []>} : vector<1x128xf32>, vector<128x128xf32>, vector<1x128xf32> -> vector<1x128xf32>
    %cst_90 = arith.constant 9.99999974E-6 : f32
    %129 = vector.broadcast %cst_90 : f32 to vector<1x128xf32>
    %130 = arith.addf %128, %129 : vector<1x128xf32>
    %131 = math.rsqrt %130 : vector<1x128xf32>
    %132 = vector.broadcast %131 : vector<1x128xf32> to vector<32x128xf32>
    %133 = arith.mulf %123, %132 : vector<32x128xf32>
    %c0_91 = arith.constant 0 : index
    %c0_92 = arith.constant 0 : index
    %134 = vector.load %arg14[%c0_91, %c0_92] : memref<1x128xf32, #tpu.memory_space<vmem>>, vector<1x128xf32>
    %135 = vector.broadcast %134 : vector<1x128xf32> to vector<32x128xf32>
    %136 = arith.mulf %133, %135 : vector<32x128xf32>
    %c0_93 = arith.constant 0 : index
    %c0_94 = arith.constant 0 : index
    %137 = vector.load %arg15[%c0_93, %c0_94] : memref<1x128xf32, #tpu.memory_space<vmem>>, vector<1x128xf32>
    %138 = vector.broadcast %137 : vector<1x128xf32> to vector<32x128xf32>
    %139 = arith.addf %136, %138 : vector<32x128xf32>
    %cst_95 = arith.constant 0.000000e+00 : f32
    %140 = vector.broadcast %cst_95 : f32 to vector<32x128xf32>
    %141 = arith.maximumf %139, %140 : vector<32x128xf32>
    %142 = arith.truncf %141 : vector<32x128xf32> to vector<32x128xbf16>
    %c0_96 = arith.constant 0 : index
    %c0_97 = arith.constant 0 : index
    %143 = vector.load %arg16[%c0_96, %c0_97] : memref<256x32xbf16, #tpu.memory_space<vmem>>, vector<256x32xbf16>
    %cst_98 = arith.constant dense<0.000000e+00> : vector<256x128xf32>
    %144 = tpu.matmul %143, %142, %cst_98 {dimension_numbers = #tpu.dot_dimension_numbers<[1], [0], [0], [1], [0, 0, 1, 1], [], []>} : vector<256x32xbf16>, vector<32x128xbf16>, vector<256x128xf32> -> vector<256x128xf32>
    %145 = arith.truncf %144 : vector<256x128xf32> to vector<256x128xbf16>
    %146 = vector.extract_strided_slice %145 {offsets = [0, 0], sizes = [64, 128], strides = [1, 1]} : vector<256x128xbf16> to vector<64x128xbf16>
    %c0_99 = arith.constant 0 : index
    %c0_100 = arith.constant 0 : index
    %c0_101 = arith.constant 0 : index
    %147 = vector.load %arg17[%c0_99, %c0_100, %c0_101] : memref<4x128x128xbf16, #tpu.memory_space<vmem>>, vector<1x128x128xbf16>
    %148 = vector.shape_cast %147 : vector<1x128x128xbf16> to vector<128x128xbf16>
    %cst_102 = arith.constant dense<0.000000e+00> : vector<64x128xf32>
    %149 = tpu.matmul %146, %148, %cst_102 {dimension_numbers = #tpu.dot_dimension_numbers<[1], [0], [0], [1], [0, 0, 1, 1], [], []>} : vector<64x128xbf16>, vector<128x128xbf16>, vector<64x128xf32> -> vector<64x128xf32>
    %150 = vector.extract_strided_slice %145 {offsets = [64, 0], sizes = [64, 128], strides = [1, 1]} : vector<256x128xbf16> to vector<64x128xbf16>
    %c1_103 = arith.constant 1 : index
    %c0_104 = arith.constant 0 : index
    %c0_105 = arith.constant 0 : index
    %151 = vector.load %arg17[%c1_103, %c0_104, %c0_105] : memref<4x128x128xbf16, #tpu.memory_space<vmem>>, vector<1x128x128xbf16>
    %152 = vector.shape_cast %151 : vector<1x128x128xbf16> to vector<128x128xbf16>
    %cst_106 = arith.constant dense<0.000000e+00> : vector<64x128xf32>
    %153 = tpu.matmul %150, %152, %cst_106 {dimension_numbers = #tpu.dot_dimension_numbers<[1], [0], [0], [1], [0, 0, 1, 1], [], []>} : vector<64x128xbf16>, vector<128x128xbf16>, vector<64x128xf32> -> vector<64x128xf32>
    %154 = arith.addf %149, %153 : vector<64x128xf32>
    %155 = vector.extract_strided_slice %145 {offsets = [128, 0], sizes = [64, 128], strides = [1, 1]} : vector<256x128xbf16> to vector<64x128xbf16>
    %c2_107 = arith.constant 2 : index
    %c0_108 = arith.constant 0 : index
    %c0_109 = arith.constant 0 : index
    %156 = vector.load %arg17[%c2_107, %c0_108, %c0_109] : memref<4x128x128xbf16, #tpu.memory_space<vmem>>, vector<1x128x128xbf16>
    %157 = vector.shape_cast %156 : vector<1x128x128xbf16> to vector<128x128xbf16>
    %cst_110 = arith.constant dense<0.000000e+00> : vector<64x128xf32>
    %158 = tpu.matmul %155, %157, %cst_110 {dimension_numbers = #tpu.dot_dimension_numbers<[1], [0], [0], [1], [0, 0, 1, 1], [], []>} : vector<64x128xbf16>, vector<128x128xbf16>, vector<64x128xf32> -> vector<64x128xf32>
    %159 = arith.addf %154, %158 : vector<64x128xf32>
    %160 = vector.extract_strided_slice %145 {offsets = [192, 0], sizes = [64, 128], strides = [1, 1]} : vector<256x128xbf16> to vector<64x128xbf16>
    %c3_111 = arith.constant 3 : index
    %c0_112 = arith.constant 0 : index
    %c0_113 = arith.constant 0 : index
    %161 = vector.load %arg17[%c3_111, %c0_112, %c0_113] : memref<4x128x128xbf16, #tpu.memory_space<vmem>>, vector<1x128x128xbf16>
    %162 = vector.shape_cast %161 : vector<1x128x128xbf16> to vector<128x128xbf16>
    %cst_114 = arith.constant dense<0.000000e+00> : vector<64x128xf32>
    %163 = tpu.matmul %160, %162, %cst_114 {dimension_numbers = #tpu.dot_dimension_numbers<[1], [0], [0], [1], [0, 0, 1, 1], [], []>} : vector<64x128xbf16>, vector<128x128xbf16>, vector<64x128xf32> -> vector<64x128xf32>
    %164 = arith.addf %159, %163 : vector<64x128xf32>
    %c0_115 = arith.constant 0 : index
    %c0_116 = arith.constant 0 : index
    %165 = vector.load %arg18[%c0_115, %c0_116] : memref<1x128xf32, #tpu.memory_space<vmem>>, vector<1x128xf32>
    %166 = vector.broadcast %165 : vector<1x128xf32> to vector<64x128xf32>
    %167 = arith.addf %164, %166 : vector<64x128xf32>
    %168 = math.tanh %167 : vector<64x128xf32>
    %c0_117 = arith.constant 0 : index
    %c0_118 = arith.constant 0 : index
    %169 = vector.load %arg19[%c0_117, %c0_118] : memref<64x128xf32, #tpu.memory_space<vmem>>, vector<64x128xf32>
    tpu.vector_store %arg19[%c0_117, %c0_118], %168 {strides = array<i32>} : memref<64x128xf32, #tpu.memory_space<vmem>>, vector<64x128xf32>,
    return
  }
}

</mosaic_0001>

<llo_original>
// kernel: generator_forward.1
$region0: #{generator_forward.1}
  #allocation0 [shape = 'u32[]', space=smem, size = 0x4, offset = 0x4, fixed_abs, tag = 'smem constant byte address 0x4 - core index']
  #allocation1 [shape = 'u32[72,128]{1,0:T(1,128)}', space=vmem, size = 0x9000, scoped, tag = 'internal scratch']
  %s0 = inlined_call_operand.vmem [shape: f32[2,16], index: 0, kind: input, shape index: {}]
  %s1 = inlined_call_operand.vmem [shape: bf16[32,2], index: 1, kind: input, shape index: {}]
  %s2 = inlined_call_operand.vmem [shape: bf16[4,16,128], index: 2, kind: input, shape index: {}]
  %s3 = inlined_call_operand.vmem [shape: f32[128,128], index: 3, kind: input, shape index: {}]
  %s4 = inlined_call_operand.vmem [shape: f32[1,128], index: 4, kind: input, shape index: {}]
  %s5 = inlined_call_operand.vmem [shape: f32[1,128], index: 5, kind: input, shape index: {}]
  %s6 = inlined_call_operand.vmem [shape: bf16[64,8], index: 6, kind: input, shape index: {}]
  %s7 = inlined_call_operand.vmem [shape: bf16[4,128,128], index: 7, kind: input, shape index: {}]
  %s8 = inlined_call_operand.vmem [shape: f32[128,128], index: 8, kind: input, shape index: {}]
  %s9 = inlined_call_operand.vmem [shape: f32[1,128], index: 9, kind: input, shape index: {}]
  %s10 = inlined_call_operand.vmem [shape: f32[1,128], index: 10, kind: input, shape index: {}]
  %s11 = inlined_call_operand.vmem [shape: bf16[128,16], index: 11, kind: input, shape index: {}]
  %s12 = inlined_call_operand.vmem [shape: bf16[4,128,128], index: 12, kind: input, shape index: {}]
  %s13 = inlined_call_operand.vmem [shape: f32[128,128], index: 13, kind: input, shape index: {}]
  %s14 = inlined_call_operand.vmem [shape: f32[1,128], index: 14, kind: input, shape index: {}]
  %s15 = inlined_call_operand.vmem [shape: f32[1,128], index: 15, kind: input, shape index: {}]
  %s16 = inlined_call_operand.vmem [shape: bf16[256,32], index: 16, kind: input, shape index: {}]
  %s17 = inlined_call_operand.vmem [shape: bf16[4,128,128], index: 17, kind: input, shape index: {}]
  %s18 = inlined_call_operand.vmem [shape: f32[1,128], index: 18, kind: input, shape index: {}]
  %s19 = inlined_call_operand.vmem [shape: f32[64,128], index: 19, kind: output, shape index: {}]
  %s20 = sld [smem:[#allocation0]]
  $region86: #{generator_forward.1} parent=0
    _
  %s22 = ssub.s32 1, %s20
  %s23 = scalar_select 0, %s22, %s20
  // Predicated region
  $region2: #{generator_forward.1} parent=0 // pred_check
    _
  $region3: #{generator_forward.1} parent=0 // pred_check_branch
    %25 = sbr.rel (0) target = $region5
  $region4: #{generator_forward.1} parent=0 // pred_region
    _
  $region5: #{generator_forward.1} parent=0 // pred_fallthru
    _
  // Predicated region
  $region6: #{generator_forward.1} parent=0 // pred_check
    _
  $region7: #{generator_forward.1} parent=0 // pred_check_branch
    %27 = sbr.rel (0) target = $region9
  $region8: #{generator_forward.1} parent=0 // pred_region
    _
  $region9: #{generator_forward.1} parent=0 // pred_fallthru
    _
  // Predicated region
  $region10: #{generator_forward.1} parent=0 // pred_check
    _
  $region11: #{generator_forward.1} parent=0 // pred_check_branch
    %29 = sbr.rel (0) target = $region13
  $region12: #{generator_forward.1} parent=0 // pred_region
    _
  $region13: #{generator_forward.1} parent=0 // pred_fallthru
    _
  // Predicated region
  $region14: #{generator_forward.1} parent=0 // pred_check
    _
  $region15: #{generator_forward.1} parent=0 // pred_check_branch
    %31 = sbr.rel (0) target = $region17
  $region16: #{generator_forward.1} parent=0 // pred_region
    _
  $region17: #{generator_forward.1} parent=0 // pred_fallthru
    _
  // Predicated region
  $region18: #{generator_forward.1} parent=0 // pred_check
    _
  $region19: #{generator_forward.1} parent=0 // pred_check_branch
    %33 = sbr.rel (0) target = $region21
  $region20: #{generator_forward.1} parent=0 // pred_region
    _
  $region21: #{generator_forward.1} parent=0 // pred_fallthru
    _
  // Predicated region
  $region22: #{generator_forward.1} parent=0 // pred_check
    _
  $region23: #{generator_forward.1} parent=0 // pred_check_branch
    %35 = sbr.rel (0) target = $region25
  $region24: #{generator_forward.1} parent=0 // pred_region
    _
  $region25: #{generator_forward.1} parent=0 // pred_fallthru
    _
  // Predicated region
  $region26: #{generator_forward.1} parent=0 // pred_check
    _
  $region27: #{generator_forward.1} parent=0 // pred_check_branch
    %37 = sbr.rel (0) target = $region29
  $region28: #{generator_forward.1} parent=0 // pred_region
    _
  $region29: #{generator_forward.1} parent=0 // pred_fallthru
    _
  // Predicated region
  $region30: #{generator_forward.1} parent=0 // pred_check
    _
  $region31: #{generator_forward.1} parent=0 // pred_check_branch
    %39 = sbr.rel (0) target = $region33
  $region32: #{generator_forward.1} parent=0 // pred_region
    _
  $region33: #{generator_forward.1} parent=0 // pred_fallthru
    _
  // Predicated region
  $region34: #{generator_forward.1} parent=0 // pred_check
    _
  $region35: #{generator_forward.1} parent=0 // pred_check_branch
    %41 = sbr.rel (0) target = $region37
  $region36: #{generator_forward.1} parent=0 // pred_region
    _
  $region37: #{generator_forward.1} parent=0 // pred_fallthru
    _
  // Predicated region
  $region38: #{generator_forward.1} parent=0 // pred_check
    _
  $region39: #{generator_forward.1} parent=0 // pred_check_branch
    %43 = sbr.rel (0) target = $region41
  $region40: #{generator_forward.1} parent=0 // pred_region
    _
  $region41: #{generator_forward.1} parent=0 // pred_fallthru
    _
  // Predicated region
  $region42: #{generator_forward.1} parent=0 // pred_check
    _
  $region43: #{generator_forward.1} parent=0 // pred_check_branch
    %45 = sbr.rel (0) target = $region45
  $region44: #{generator_forward.1} parent=0 // pred_region
    _
  $region45: #{generator_forward.1} parent=0 // pred_fallthru
    _
  // Predicated region
  $region46: #{generator_forward.1} parent=0 // pred_check
    _
  $region47: #{generator_forward.1} parent=0 // pred_check_branch
    %47 = sbr.rel (0) target = $region49
  $region48: #{generator_forward.1} parent=0 // pred_region
    _
  $region49: #{generator_forward.1} parent=0 // pred_fallthru
    _
  // Predicated region
  $region50: #{generator_forward.1} parent=0 // pred_check
    _
  $region51: #{generator_forward.1} parent=0 // pred_check_branch
    %49 = sbr.rel (0) target = $region53
  $region52: #{generator_forward.1} parent=0 // pred_region
    _
  $region53: #{generator_forward.1} parent=0 // pred_fallthru
    _
  // Predicated region
  $region54: #{generator_forward.1} parent=0 // pred_check
    _
  $region55: #{generator_forward.1} parent=0 // pred_check_branch
    %51 = sbr.rel (0) target = $region57
  $region56: #{generator_forward.1} parent=0 // pred_region
    _
  $region57: #{generator_forward.1} parent=0 // pred_fallthru
    _
  // Predicated region
  $region58: #{generator_forward.1} parent=0 // pred_check
    _
  $region59: #{generator_forward.1} parent=0 // pred_check_branch
    %53 = sbr.rel (0) target = $region61
  $region60: #{generator_forward.1} parent=0 // pred_region
    _
  $region61: #{generator_forward.1} parent=0 // pred_fallthru
    _
  // Predicated region
  $region62: #{generator_forward.1} parent=0 // pred_check
    _
  $region63: #{generator_forward.1} parent=0 // pred_check_branch
    %55 = sbr.rel (0) target = $region65
  $region64: #{generator_forward.1} parent=0 // pred_region
    _
  $region65: #{generator_forward.1} parent=0 // pred_fallthru
    _
  // Predicated region
  $region66: #{generator_forward.1} parent=0 // pred_check
    _
  $region67: #{generator_forward.1} parent=0 // pred_check_branch
    %57 = sbr.rel (0) target = $region69
  $region68: #{generator_forward.1} parent=0 // pred_region
    _
  $region69: #{generator_forward.1} parent=0 // pred_fallthru
    _
  // Predicated region
  $region70: #{generator_forward.1} parent=0 // pred_check
    _
  $region71: #{generator_forward.1} parent=0 // pred_check_branch
    %59 = sbr.rel (0) target = $region73
  $region72: #{generator_forward.1} parent=0 // pred_region
    _
  $region73: #{generator_forward.1} parent=0 // pred_fallthru
    _
  // Predicated region
  $region74: #{generator_forward.1} parent=0 // pred_check
    _
  $region75: #{generator_forward.1} parent=0 // pred_check_branch
    %61 = sbr.rel (0) target = $region77
  $region76: #{generator_forward.1} parent=0 // pred_region
    _
  $region77: #{generator_forward.1} parent=0 // pred_fallthru
    _
  %v63 = vld [vmem:[%s0] sm:$0x3]
  %v64 = vpack.c.bf16 %v63, %v63
  %v65 = vld [vmem:[%s1] sm:$0xf]
  %v66 = vld [vmem:[%s1 + $0x4] sm:$0xf]
  %v67 = vld [vmem:[%s1 + $0x8] sm:$0xf]
  %v68 = vld [vmem:[%s1 + $0xc] sm:$0xf]
  %v73 = vunpack.c.l.b16 %v65
  %v74 = vunpack.c.l.b16 %v66
  %v75 = vunpack.c.l.b16 %v67
  %v76 = vunpack.c.l.b16 %v68
  %v77 = vpack.c.b16 %v74, %v73
  %v78 = vpack.c.b16 %v76, %v75
  %vm79 = vcmask 15360
  %v81 = vsel %vm79, %v77, 0
  %v84 = vsel %vm79, %v78, 0
  %vm86 = vcmask 1040384
  %v88 = vsel %vm86, %v64, 0
  %90 = vmatpush.bf16.msra.mxu0 0
  %91 = vmatpush.bf16.msra.mxu0 0
  %92 = vmatpush.bf16.msra.mxu0 0
  %93 = vmatpush.bf16.msra.mxu0 0
  %94 = vmatpush.bf16.msra.mxu0 0
  %95 = vmatpush.bf16.msra.mxu0 0
  %96 = vmatpush.bf16.msra.mxu0 0
  %97 = vmatpush.bf16.msra.mxu0 %v88
  %98 = vmatmul.bf16.gmra.mxu0 %v81
  %v99 = vpop.f32.mrf.mxu0
  %v100 = vadd.f32 0.0, %v99
  %v101 = vpop.f32.mrf.mxu0
  %v102 = vadd.f32 0.0, %v101
  %103 = vmatmul.bf16.gmra.mxu0 %v84
  %v104 = vpop.f32.mrf.mxu0
  %v105 = vadd.f32 0.0, %v104
  %v106 = vpop.f32.mrf.mxu0
  %v107 = vadd.f32 0.0, %v106
  %108 = vdwg.mxu0
  %v109 = vpack.c.bf16 %v100, %v100
  %v110 = vpack.c.bf16 %v102, %v102
  %v111 = vpack.c.bf16 %v105, %v105
  %v112 = vpack.c.bf16 %v107, %v107
  %v113 = vld [vmem:[%s2] sm:$0xf]
  %v114 = vld [vmem:[%s2 + $0x4] sm:$0xf]
  %s115 = scalar_lea.vmem %s2, 8
  %v116 = vld [vmem:[%s115] sm:$0xf]
  %v117 = vld [vmem:[%s115 + $0x4] sm:$0xf]
  %v120 = vunpack.c.l.b16 %v116
  %v121 = vunpack.c.l.b16 %v117
  %v122 = vpack.c.b16 %v121, %v120
  %vm124 = vcmask 130048
  %v126 = vsel %vm124, %v110, 0
  %128 = vmatpush.bf16.msra.mxu0 0
  %129 = vmatpush.bf16.msra.mxu0 0
  %130 = vmatpush.bf16.msra.mxu0 0
  %131 = vmatpush.bf16.msra.mxu0 0
  %132 = vmatpush.bf16.msra.mxu0 0
  %133 = vmatpush.bf16.msra.mxu0 0
  %134 = vmatpush.bf16.msra.mxu0 0
  %135 = vmatpush.bf16.msra.mxu0 %v122
  %136 = vmatmul.bf16.gmra.mxu0 %v126
  %v137 = vpop.f32.mrf.mxu0
  %v138 = vadd.f32 0.0, %v137
  %v139 = vpop.f32.mrf.mxu0
  %140 = vdwg.mxu0
  %v143 = vunpack.c.l.b16 %v113
  %v144 = vunpack.c.l.b16 %v114
  %v145 = vpack.c.b16 %v144, %v143
  %v148 = vsel %vm124, %v109, 0
  %150 = vmatpush.bf16.msra.mxu0 0
  %151 = vmatpush.bf16.msra.mxu0 0
  %152 = vmatpush.bf16.msra.mxu0 0
  %153 = vmatpush.bf16.msra.mxu0 0
  %154 = vmatpush.bf16.msra.mxu0 0
  %155 = vmatpush.bf16.msra.mxu0 0
  %156 = vmatpush.bf16.msra.mxu0 0
  %157 = vmatpush.bf16.msra.mxu0 %v145
  %158 = vmatmul.bf16.gmra.mxu0 %v148
  %v159 = vpop.f32.mrf.mxu0
  %v160 = vadd.f32 %v138, %v159
  %v161 = vpop.f32.mrf.mxu0
  %162 = vdwg.mxu0
  %s163 = scalar_lea.vmem %s2, 16
  %v164 = vld [vmem:[%s163] sm:$0xf]
  %v165 = vld [vmem:[%s163 + $0x4] sm:$0xf]
  %v168 = vunpack.c.l.b16 %v164
  %v169 = vunpack.c.l.b16 %v165
  %v170 = vpack.c.b16 %v169, %v168
  %v173 = vsel %vm124, %v111, 0
  %175 = vmatpush.bf16.msra.mxu0 0
  %176 = vmatpush.bf16.msra.mxu0 0
  %177 = vmatpush.bf16.msra.mxu0 0
  %178 = vmatpush.bf16.msra.mxu0 0
  %179 = vmatpush.bf16.msra.mxu0 0
  %180 = vmatpush.bf16.msra.mxu0 0
  %181 = vmatpush.bf16.msra.mxu0 0
  %182 = vmatpush.bf16.msra.mxu0 %v170
  %183 = vmatmul.bf16.gmra.mxu0 %v173
  %v184 = vpop.f32.mrf.mxu0
  %v185 = vadd.f32 0.0, %v184
  %v186 = vpop.f32.mrf.mxu0
  %187 = vdwg.mxu0
  %v188 = vadd.f32 %v160, %v185
  %s189 = scalar_lea.vmem %s2, 24
  %v190 = vld [vmem:[%s189] sm:$0xf]
  %v191 = vld [vmem:[%s189 + $0x4] sm:$0xf]
  %v194 = vunpack.c.l.b16 %v190
  %v195 = vunpack.c.l.b16 %v191
  %v196 = vpack.c.b16 %v195, %v194
  %v199 = vsel %vm124, %v112, 0
  %201 = vmatpush.bf16.msra.mxu0 0
  %202 = vmatpush.bf16.msra.mxu0 0
  %203 = vmatpush.bf16.msra.mxu0 0
  %204 = vmatpush.bf16.msra.mxu0 0
  %205 = vmatpush.bf16.msra.mxu0 0
  %206 = vmatpush.bf16.msra.mxu0 0
  %207 = vmatpush.bf16.msra.mxu0 0
  %208 = vmatpush.bf16.msra.mxu0 %v196
  %209 = vmatmul.bf16.gmra.mxu0 %v199
  %v210 = vpop.f32.mrf.mxu0
  %v211 = vadd.f32 0.0, %v210
  %v212 = vpop.f32.mrf.mxu0
  %213 = vdwg.mxu0
  %v214 = vadd.f32 %v188, %v211
  %v215 = vrot.slane %v214, 4
  %v216 = vadd.f32 %v214, %v215
  %v217 = vrot.slane %v216, 2
  %v218 = vadd.f32 %v216, %v217
  %v219 = vrot.slane %v218, 1
  %v220 = vadd.f32 %v218, %v219
  %v221 = vld [vmem:[%s3] sm:$0xff]
  %v222 = vld [vmem:[%s3 + $0x8] sm:$0xff]
  %v223 = vld [vmem:[%s3 + $0x10] sm:$0xff]
  %v224 = vld [vmem:[%s3 + $0x18] sm:$0xff]
  %v225 = vld [vmem:[%s3 + $0x20] sm:$0xff]
  %v226 = vld [vmem:[%s3 + $0x28] sm:$0xff]
  %v227 = vld [vmem:[%s3 + $0x30] sm:$0xff]
  %v228 = vld [vmem:[%s3 + $0x38] sm:$0xff]
  %v229 = vld [vmem:[%s3 + $0x40] sm:$0xff]
  %v230 = vld [vmem:[%s3 + $0x48] sm:$0xff]
  %v231 = vld [vmem:[%s3 + $0x50] sm:$0xff]
  %v232 = vld [vmem:[%s3 + $0x58] sm:$0xff]
  %v233 = vld [vmem:[%s3 + $0x60] sm:$0xff]
  %v234 = vld [vmem:[%s3 + $0x68] sm:$0xff]
  %v235 = vld [vmem:[%s3 + $0x70] sm:$0xff]
  %v236 = vld [vmem:[%s3 + $0x78] sm:$0xff]
  %237 = vmatpush.msra.mxu0 %v236
  %238 = vmatpush.msra.mxu0 %v235
  %239 = vmatpush.msra.mxu0 %v234
  %240 = vmatpush.msra.mxu0 %v233
  %241 = vmatpush.msra.mxu0 %v232
  %242 = vmatpush.msra.mxu0 %v231
  %243 = vmatpush.msra.mxu0 %v230
  %244 = vmatpush.msra.mxu0 %v229
  %245 = vmatpush.msra.mxu0 %v228
  %246 = vmatpush.msra.mxu0 %v227
  %247 = vmatpush.msra.mxu0 %v226
  %248 = vmatpush.msra.mxu0 %v225
  %249 = vmatpush.msra.mxu0 %v224
  %250 = vmatpush.msra.mxu0 %v223
  %251 = vmatpush.msra.mxu0 %v222
  %252 = vmatpush.msra.mxu0 %v221
  %253 = vmatmul.f32.gmra.mxu0 %v220
  %v254 = vpop.f32.mrf.mxu0
  %v255 = vadd.f32 0.0, %v254
  %256 = vdwg.mxu0
  %v257 = vperm.slane %v255, 0
  %v258 = vsub.f32 %v214, %v257
  %v259 = vmul.f32 %v258, %v258
  %v260 = vrot.slane %v259, 4
  %v261 = vadd.f32 %v259, %v260
  %v262 = vrot.slane %v261, 2
  %v263 = vadd.f32 %v261, %v262
  %v264 = vrot.slane %v263, 1
  %v265 = vadd.f32 %v263, %v264
  %266 = vmatpush.msra.mxu0 %v236
  %267 = vmatpush.msra.mxu0 %v235
  %268 = vmatpush.msra.mxu0 %v234
  %269 = vmatpush.msra.mxu0 %v233
  %270 = vmatpush.msra.mxu0 %v232
  %271 = vmatpush.msra.mxu0 %v231
  %272 = vmatpush.msra.mxu0 %v230
  %273 = vmatpush.msra.mxu0 %v229
  %274 = vmatpush.msra.mxu0 %v228
  %275 = vmatpush.msra.mxu0 %v227
  %276 = vmatpush.msra.mxu0 %v226
  %277 = vmatpush.msra.mxu0 %v225
  %278 = vmatpush.msra.mxu0 %v224
  %279 = vmatpush.msra.mxu0 %v223
  %280 = vmatpush.msra.mxu0 %v222
  %281 = vmatpush.msra.mxu0 %v221
  %282 = vmatmul.f32.gmra.mxu0 %v265
  %v283 = vpop.f32.mrf.mxu0
  %v284 = vadd.f32 1e-05, %v283
  %285 = vdwg.mxu0
  %v286 = vrsqrt.pop %v284
  %v287 = vmul.f32 %v286, %v284
  %v288 = vmul.f32 %v287, %v286
  %v289 = vmul.f32 0.5, %v288
  %v290 = vsub.f32 1.5, %v289
  %v291 = vmul.f32 %v286, %v290
  %vm292 = vweird.f32 %v284
  %vm293 = vweird.f32 %v286
  %vm294 = vmor %vm292, %vm293
  %v295 = vsel %vm294, %v286, %v291
  %v296 = vperm.slane %v295, 0
  %v297 = vmul.f32 %v258, %v296
  %v298 = vld [vmem:[%s4] sm:$0x1]
  %v300 = vperm.slane %v298, 0
  %v302 = vmul.f32 %v297, %v300
  %v303 = vld [vmem:[%s5] sm:$0x1]
  %v305 = vperm.slane %v303, 0
  %v307 = vadd.f32 %v302, %v305
  %v308 = vmax.f32 %v307, 0.0
  %v309 = vpack.c.bf16 %v308, %v308
  %v310 = vld [vmem:[%s6] sm:$0xf]
  %v311 = vld [vmem:[%s6 + $0x4] sm:$0xf]
  %v312 = vld [vmem:[%s6 + $0x8] sm:$0xf]
  %v313 = vld [vmem:[%s6 + $0xc] sm:$0xf]
  %v314 = vld [vmem:[%s6 + $0x10] sm:$0xf]
  %v315 = vld [vmem:[%s6 + $0x14] sm:$0xf]
  %v316 = vld [vmem:[%s6 + $0x18] sm:$0xf]
  %v317 = vld [vmem:[%s6 + $0x1c] sm:$0xf]
  %v326 = vunpack.c.l.b16 %v310
  %v327 = vunpack.c.l.b16 %v311
  %v328 = vunpack.c.l.b16 %v312
  %v329 = vunpack.c.l.b16 %v313
  %v330 = vunpack.c.l.b16 %v314
  %v331 = vunpack.c.l.b16 %v315
  %v332 = vunpack.c.l.b16 %v316
  %v333 = vunpack.c.l.b16 %v317
  %v334 = vpack.c.b16 %v327, %v326
  %v335 = vpack.c.b16 %v329, %v328
  %v336 = vpack.c.b16 %v331, %v330
  %v337 = vpack.c.b16 %v333, %v332
  %vm338 = vcmask 64512
  %v340 = vsel %vm338, %v334, 0
  %v343 = vsel %vm338, %v335, 0
  %v346 = vsel %vm338, %v336, 0
  %v349 = vsel %vm338, %v337, 0
  %vm351 = vcmask 1043456
  %v353 = vsel %vm351, %v309, 0
  %355 = vmatpush.bf16.msra.mxu0 0
  %356 = vmatpush.bf16.msra.mxu0 0
  %357 = vmatpush.bf16.msra.mxu0 0
  %358 = vmatpush.bf16.msra.mxu0 0
  %359 = vmatpush.bf16.msra.mxu0 0
  %360 = vmatpush.bf16.msra.mxu0 0
  %361 = vmatpush.bf16.msra.mxu0 0
  %362 = vmatpush.bf16.msra.mxu0 %v353
  %363 = vmatmul.bf16.gmra.mxu0 %v340
  %v364 = vpop.f32.mrf.mxu0
  %v365 = vadd.f32 0.0, %v364
  %v366 = vpop.f32.mrf.mxu0
  %v367 = vadd.f32 0.0, %v366
  %368 = vmatmul.bf16.gmra.mxu0 %v343
  %v369 = vpop.f32.mrf.mxu0
  %v370 = vadd.f32 0.0, %v369
  %v371 = vpop.f32.mrf.mxu0
  %v372 = vadd.f32 0.0, %v371
  %373 = vmatmul.bf16.gmra.mxu0 %v346
  %v374 = vpop.f32.mrf.mxu0
  %v375 = vadd.f32 0.0, %v374
  %v376 = vpop.f32.mrf.mxu0
  %v377 = vadd.f32 0.0, %v376
  %378 = vmatmul.bf16.gmra.mxu0 %v349
  %v379 = vpop.f32.mrf.mxu0
  %v380 = vadd.f32 0.0, %v379
  %v381 = vpop.f32.mrf.mxu0
  %v382 = vadd.f32 0.0, %v381
  %383 = vdwg.mxu0
  %v384 = vpack.c.bf16 %v365, %v365
  %v385 = vpack.c.bf16 %v367, %v367
  %v386 = vpack.c.bf16 %v370, %v370
  %v387 = vpack.c.bf16 %v372, %v372
  %v388 = vpack.c.bf16 %v375, %v375
  %v389 = vpack.c.bf16 %v377, %v377
  %v390 = vpack.c.bf16 %v380, %v380
  %v391 = vpack.c.bf16 %v382, %v382
  %v392 = vld [vmem:[%s7] sm:$0xf]
  %v393 = vld [vmem:[%s7 + $0x4] sm:$0xf]
  %v394 = vld [vmem:[%s7 + $0x8] sm:$0xf]
  %v395 = vld [vmem:[%s7 + $0xc] sm:$0xf]
  %v396 = vld [vmem:[%s7 + $0x10] sm:$0xf]
  %v397 = vld [vmem:[%s7 + $0x14] sm:$0xf]
  %v398 = vld [vmem:[%s7 + $0x18] sm:$0xf]
  %v399 = vld [vmem:[%s7 + $0x1c] sm:$0xf]
  %v400 = vld [vmem:[%s7 + $0x20] sm:$0xf]
  %v401 = vld [vmem:[%s7 + $0x24] sm:$0xf]
  %v402 = vld [vmem:[%s7 + $0x28] sm:$0xf]
  %v403 = vld [vmem:[%s7 + $0x2c] sm:$0xf]
  %v404 = vld [vmem:[%s7 + $0x30] sm:$0xf]
  %v405 = vld [vmem:[%s7 + $0x34] sm:$0xf]
  %v406 = vld [vmem:[%s7 + $0x38] sm:$0xf]
  %v407 = vld [vmem:[%s7 + $0x3c] sm:$0xf]
  %s408 = scalar_lea.vmem %s7, 64
  %v409 = vld [vmem:[%s408] sm:$0xf]
  %v410 = vld [vmem:[%s408 + $0x4] sm:$0xf]
  %v411 = vld [vmem:[%s408 + $0x8] sm:$0xf]
  %v412 = vld [vmem:[%s408 + $0xc] sm:$0xf]
  %v413 = vld [vmem:[%s408 + $0x10] sm:$0xf]
  %v414 = vld [vmem:[%s408 + $0x14] sm:$0xf]
  %v415 = vld [vmem:[%s408 + $0x18] sm:$0xf]
  %v416 = vld [vmem:[%s408 + $0x1c] sm:$0xf]
  %v417 = vld [vmem:[%s408 + $0x20] sm:$0xf]
  %v418 = vld [vmem:[%s408 + $0x24] sm:$0xf]
  %v419 = vld [vmem:[%s408 + $0x28] sm:$0xf]
  %v420 = vld [vmem:[%s408 + $0x2c] sm:$0xf]
  %v421 = vld [vmem:[%s408 + $0x30] sm:$0xf]
  %v422 = vld [vmem:[%s408 + $0x34] sm:$0xf]
  %v423 = vld [vmem:[%s408 + $0x38] sm:$0xf]
  %v424 = vld [vmem:[%s408 + $0x3c] sm:$0xf]
  %v427 = vunpack.c.l.b16 %v386
  %v428 = vunpack.c.l.b16 %v387
  %v429 = vpack.c.b16 %v428, %v427
  %v447 = vunpack.c.l.b16 %v409
  %v448 = vunpack.c.l.b16 %v410
  %v449 = vunpack.c.l.b16 %v411
  %v450 = vunpack.c.l.b16 %v412
  %v451 = vunpack.c.l.b16 %v413
  %v452 = vunpack.c.l.b16 %v414
  %v453 = vunpack.c.l.b16 %v415
  %v454 = vunpack.c.l.b16 %v416
  %v455 = vunpack.c.l.b16 %v417
  %v456 = vunpack.c.l.b16 %v418
  %v457 = vunpack.c.l.b16 %v419
  %v458 = vunpack.c.l.b16 %v420
  %v459 = vunpack.c.l.b16 %v421
  %v460 = vunpack.c.l.b16 %v422
  %v461 = vunpack.c.l.b16 %v423
  %v462 = vunpack.c.l.b16 %v424
  %v463 = vpack.c.b16 %v448, %v447
  %v464 = vpack.c.b16 %v450, %v449
  %v465 = vpack.c.b16 %v452, %v451
  %v466 = vpack.c.b16 %v454, %v453
  %v467 = vpack.c.b16 %v456, %v455
  %v468 = vpack.c.b16 %v458, %v457
  %v469 = vpack.c.b16 %v460, %v459
  %v470 = vpack.c.b16 %v462, %v461
  %479 = vmatpush.bf16.msra.mxu0 %v470
  %480 = vmatpush.bf16.msra.mxu0 %v469
  %481 = vmatpush.bf16.msra.mxu0 %v468
  %482 = vmatpush.bf16.msra.mxu0 %v467
  %483 = vmatpush.bf16.msra.mxu0 %v466
  %484 = vmatpush.bf16.msra.mxu0 %v465
  %485 = vmatpush.bf16.msra.mxu0 %v464
  %486 = vmatpush.bf16.msra.mxu0 %v463
  %487 = vmatmul.bf16.gmra.mxu0 %v429
  %v488 = vpop.f32.mrf.mxu0
  %v489 = vadd.f32 0.0, %v488
  %v490 = vpop.f32.mrf.mxu0
  %v491 = vadd.f32 0.0, %v490
  %492 = vdwg.mxu0
  %v495 = vunpack.c.l.b16 %v384
  %v496 = vunpack.c.l.b16 %v385
  %v497 = vpack.c.b16 %v496, %v495
  %v515 = vunpack.c.l.b16 %v392
  %v516 = vunpack.c.l.b16 %v393
  %v517 = vunpack.c.l.b16 %v394
  %v518 = vunpack.c.l.b16 %v395
  %v519 = vunpack.c.l.b16 %v396
  %v520 = vunpack.c.l.b16 %v397
  %v521 = vunpack.c.l.b16 %v398
  %v522 = vunpack.c.l.b16 %v399
  %v523 = vunpack.c.l.b16 %v400
  %v524 = vunpack.c.l.b16 %v401
  %v525 = vunpack.c.l.b16 %v402
  %v526 = vunpack.c.l.b16 %v403
  %v527 = vunpack.c.l.b16 %v404
  %v528 = vunpack.c.l.b16 %v405
  %v529 = vunpack.c.l.b16 %v406
  %v530 = vunpack.c.l.b16 %v407
  %v531 = vpack.c.b16 %v516, %v515
  %v532 = vpack.c.b16 %v518, %v517
  %v533 = vpack.c.b16 %v520, %v519
  %v534 = vpack.c.b16 %v522, %v521
  %v535 = vpack.c.b16 %v524, %v523
  %v536 = vpack.c.b16 %v526, %v525
  %v537 = vpack.c.b16 %v528, %v527
  %v538 = vpack.c.b16 %v530, %v529
  %547 = vmatpush.bf16.msra.mxu0 %v538
  %548 = vmatpush.bf16.msra.mxu0 %v537
  %549 = vmatpush.bf16.msra.mxu0 %v536
  %550 = vmatpush.bf16.msra.mxu0 %v535
  %551 = vmatpush.bf16.msra.mxu0 %v534
  %552 = vmatpush.bf16.msra.mxu0 %v533
  %553 = vmatpush.bf16.msra.mxu0 %v532
  %554 = vmatpush.bf16.msra.mxu0 %v531
  %555 = vmatmul.bf16.gmra.mxu0 %v497
  %v556 = vpop.f32.mrf.mxu0
  %v557 = vadd.f32 %v489, %v556
  %v558 = vpop.f32.mrf.mxu0
  %v559 = vadd.f32 %v491, %v558
  %560 = vdwg.mxu0
  %s561 = scalar_lea.vmem %s7, 128
  %v562 = vld [vmem:[%s561] sm:$0xf]
  %v563 = vld [vmem:[%s561 + $0x4] sm:$0xf]
  %v564 = vld [vmem:[%s561 + $0x8] sm:$0xf]
  %v565 = vld [vmem:[%s561 + $0xc] sm:$0xf]
  %v566 = vld [vmem:[%s561 + $0x10] sm:$0xf]
  %v567 = vld [vmem:[%s561 + $0x14] sm:$0xf]
  %v568 = vld [vmem:[%s561 + $0x18] sm:$0xf]
  %v569 = vld [vmem:[%s561 + $0x1c] sm:$0xf]
  %v570 = vld [vmem:[%s561 + $0x20] sm:$0xf]
  %v571 = vld [vmem:[%s561 + $0x24] sm:$0xf]
  %v572 = vld [vmem:[%s561 + $0x28] sm:$0xf]
  %v573 = vld [vmem:[%s561 + $0x2c] sm:$0xf]
  %v574 = vld [vmem:[%s561 + $0x30] sm:$0xf]
  %v575 = vld [vmem:[%s561 + $0x34] sm:$0xf]
  %v576 = vld [vmem:[%s561 + $0x38] sm:$0xf]
  %v577 = vld [vmem:[%s561 + $0x3c] sm:$0xf]
  %v580 = vunpack.c.l.b16 %v388
  %v581 = vunpack.c.l.b16 %v389
  %v582 = vpack.c.b16 %v581, %v580
  %v600 = vunpack.c.l.b16 %v562
  %v601 = vunpack.c.l.b16 %v563
  %v602 = vunpack.c.l.b16 %v564
  %v603 = vunpack.c.l.b16 %v565
  %v604 = vunpack.c.l.b16 %v566
  %v605 = vunpack.c.l.b16 %v567
  %v606 = vunpack.c.l.b16 %v568
  %v607 = vunpack.c.l.b16 %v569
  %v608 = vunpack.c.l.b16 %v570
  %v609 = vunpack.c.l.b16 %v571
  %v610 = vunpack.c.l.b16 %v572
  %v611 = vunpack.c.l.b16 %v573
  %v612 = vunpack.c.l.b16 %v574
  %v613 = vunpack.c.l.b16 %v575
  %v614 = vunpack.c.l.b16 %v576
  %v615 = vunpack.c.l.b16 %v577
  %v616 = vpack.c.b16 %v601, %v600
  %v617 = vpack.c.b16 %v603, %v602
  %v618 = vpack.c.b16 %v605, %v604
  %v619 = vpack.c.b16 %v607, %v606
  %v620 = vpack.c.b16 %v609, %v608
  %v621 = vpack.c.b16 %v611, %v610
  %v622 = vpack.c.b16 %v613, %v612
  %v623 = vpack.c.b16 %v615, %v614
  %632 = vmatpush.bf16.msra.mxu0 %v623
  %633 = vmatpush.bf16.msra.mxu0 %v622
  %634 = vmatpush.bf16.msra.mxu0 %v621
  %635 = vmatpush.bf16.msra.mxu0 %v620
  %636 = vmatpush.bf16.msra.mxu0 %v619
  %637 = vmatpush.bf16.msra.mxu0 %v618
  %638 = vmatpush.bf16.msra.mxu0 %v617
  %639 = vmatpush.bf16.msra.mxu0 %v616
  %640 = vmatmul.bf16.gmra.mxu0 %v582
  %v641 = vpop.f32.mrf.mxu0
  %v642 = vadd.f32 0.0, %v641
  %v643 = vpop.f32.mrf.mxu0
  %v644 = vadd.f32 0.0, %v643
  %645 = vdwg.mxu0
  %v646 = vadd.f32 %v557, %v642
  %v647 = vadd.f32 %v559, %v644
  %s648 = scalar_lea.vmem %s7, 192
  %v649 = vld [vmem:[%s648] sm:$0xf]
  %v650 = vld [vmem:[%s648 + $0x4] sm:$0xf]
  %v651 = vld [vmem:[%s648 + $0x8] sm:$0xf]
  %v652 = vld [vmem:[%s648 + $0xc] sm:$0xf]
  %v653 = vld [vmem:[%s648 + $0x10] sm:$0xf]
  %v654 = vld [vmem:[%s648 + $0x14] sm:$0xf]
  %v655 = vld [vmem:[%s648 + $0x18] sm:$0xf]
  %v656 = vld [vmem:[%s648 + $0x1c] sm:$0xf]
  %v657 = vld [vmem:[%s648 + $0x20] sm:$0xf]
  %v658 = vld [vmem:[%s648 + $0x24] sm:$0xf]
  %v659 = vld [vmem:[%s648 + $0x28] sm:$0xf]
  %v660 = vld [vmem:[%s648 + $0x2c] sm:$0xf]
  %v661 = vld [vmem:[%s648 + $0x30] sm:$0xf]
  %v662 = vld [vmem:[%s648 + $0x34] sm:$0xf]
  %v663 = vld [vmem:[%s648 + $0x38] sm:$0xf]
  %v664 = vld [vmem:[%s648 + $0x3c] sm:$0xf]
  %v667 = vunpack.c.l.b16 %v390
  %v668 = vunpack.c.l.b16 %v391
  %v669 = vpack.c.b16 %v668, %v667
  %v687 = vunpack.c.l.b16 %v649
  %v688 = vunpack.c.l.b16 %v650
  %v689 = vunpack.c.l.b16 %v651
  %v690 = vunpack.c.l.b16 %v652
  %v691 = vunpack.c.l.b16 %v653
  %v692 = vunpack.c.l.b16 %v654
  %v693 = vunpack.c.l.b16 %v655
  %v694 = vunpack.c.l.b16 %v656
  %v695 = vunpack.c.l.b16 %v657
  %v696 = vunpack.c.l.b16 %v658
  %v697 = vunpack.c.l.b16 %v659
  %v698 = vunpack.c.l.b16 %v660
  %v699 = vunpack.c.l.b16 %v661
  %v700 = vunpack.c.l.b16 %v662
  %v701 = vunpack.c.l.b16 %v663
  %v702 = vunpack.c.l.b16 %v664
  %v703 = vpack.c.b16 %v688, %v687
  %v704 = vpack.c.b16 %v690, %v689
  %v705 = vpack.c.b16 %v692, %v691
  %v706 = vpack.c.b16 %v694, %v693
  %v707 = vpack.c.b16 %v696, %v695
  %v708 = vpack.c.b16 %v698, %v697
  %v709 = vpack.c.b16 %v700, %v699
  %v710 = vpack.c.b16 %v702, %v701
  %719 = vmatpush.bf16.msra.mxu0 %v710
  %720 = vmatpush.bf16.msra.mxu0 %v709
  %721 = vmatpush.bf16.msra.mxu0 %v708
  %722 = vmatpush.bf16.msra.mxu0 %v707
  %723 = vmatpush.bf16.msra.mxu0 %v706
  %724 = vmatpush.bf16.msra.mxu0 %v705
  %725 = vmatpush.bf16.msra.mxu0 %v704
  %726 = vmatpush.bf16.msra.mxu0 %v703
  %727 = vmatmul.bf16.gmra.mxu0 %v669
  %v728 = vpop.f32.mrf.mxu0
  %v729 = vadd.f32 0.0, %v728
  %v730 = vpop.f32.mrf.mxu0
  %v731 = vadd.f32 0.0, %v730
  %732 = vdwg.mxu0
  %v733 = vadd.f32 %v646, %v729
  %v734 = vadd.f32 %v647, %v731
  %v735 = vadd.f32 %v733, %v734
  %v736 = vrot.slane %v735, 4
  %v737 = vadd.f32 %v735, %v736
  %v738 = vrot.slane %v737, 2
  %v739 = vadd.f32 %v737, %v738
  %v740 = vrot.slane %v739, 1
  %v741 = vadd.f32 %v739, %v740
  %v742 = vld [vmem:[%s8] sm:$0xff]
  %v743 = vld [vmem:[%s8 + $0x8] sm:$0xff]
  %v744 = vld [vmem:[%s8 + $0x10] sm:$0xff]
  %v745 = vld [vmem:[%s8 + $0x18] sm:$0xff]
  %v746 = vld [vmem:[%s8 + $0x20] sm:$0xff]
  %v747 = vld [vmem:[%s8 + $0x28] sm:$0xff]
  %v748 = vld [vmem:[%s8 + $0x30] sm:$0xff]
  %v749 = vld [vmem:[%s8 + $0x38] sm:$0xff]
  %v750 = vld [vmem:[%s8 + $0x40] sm:$0xff]
  %v751 = vld [vmem:[%s8 + $0x48] sm:$0xff]
  %v752 = vld [vmem:[%s8 + $0x50] sm:$0xff]
  %v753 = vld [vmem:[%s8 + $0x58] sm:$0xff]
  %v754 = vld [vmem:[%s8 + $0x60] sm:$0xff]
  %v755 = vld [vmem:[%s8 + $0x68] sm:$0xff]
  %v756 = vld [vmem:[%s8 + $0x70] sm:$0xff]
  %v757 = vld [vmem:[%s8 + $0x78] sm:$0xff]
  %758 = vmatpush.msra.mxu0 %v757
  %759 = vmatpush.msra.mxu0 %v756
  %760 = vmatpush.msra.mxu0 %v755
  %761 = vmatpush.msra.mxu0 %v754
  %762 = vmatpush.msra.mxu0 %v753
  %763 = vmatpush.msra.mxu0 %v752
  %764 = vmatpush.msra.mxu0 %v751
  %765 = vmatpush.msra.mxu0 %v750
  %766 = vmatpush.msra.mxu0 %v749
  %767 = vmatpush.msra.mxu0 %v748
  %768 = vmatpush.msra.mxu0 %v747
  %769 = vmatpush.msra.mxu0 %v746
  %770 = vmatpush.msra.mxu0 %v745
  %771 = vmatpush.msra.mxu0 %v744
  %772 = vmatpush.msra.mxu0 %v743
  %773 = vmatpush.msra.mxu0 %v742
  %774 = vmatmul.f32.gmra.mxu0 %v741
  %v775 = vpop.f32.mrf.mxu0
  %v776 = vadd.f32 0.0, %v775
  %777 = vdwg.mxu0
  %v778 = vperm.slane %v776, 0
  %v779 = vsub.f32 %v733, %v778
  %v780 = vsub.f32 %v734, %v778
  %v781 = vmul.f32 %v779, %v779
  %v782 = vmul.f32 %v780, %v780
  %v783 = vadd.f32 %v781, %v782
  %v784 = vrot.slane %v783, 4
  %v785 = vadd.f32 %v783, %v784
  %v786 = vrot.slane %v785, 2
  %v787 = vadd.f32 %v785, %v786
  %v788 = vrot.slane %v787, 1
  %v789 = vadd.f32 %v787, %v788
  %790 = vmatpush.msra.mxu0 %v757
  %791 = vmatpush.msra.mxu0 %v756
  %792 = vmatpush.msra.mxu0 %v755
  %793 = vmatpush.msra.mxu0 %v754
  %794 = vmatpush.msra.mxu0 %v753
  %795 = vmatpush.msra.mxu0 %v752
  %796 = vmatpush.msra.mxu0 %v751
  %797 = vmatpush.msra.mxu0 %v750
  %798 = vmatpush.msra.mxu0 %v749
  %799 = vmatpush.msra.mxu0 %v748
  %800 = vmatpush.msra.mxu0 %v747
  %801 = vmatpush.msra.mxu0 %v746
  %802 = vmatpush.msra.mxu0 %v745
  %803 = vmatpush.msra.mxu0 %v744
  %804 = vmatpush.msra.mxu0 %v743
  %805 = vmatpush.msra.mxu0 %v742
  %806 = vmatmul.f32.gmra.mxu0 %v789
  %v807 = vpop.f32.mrf.mxu0
  %v808 = vadd.f32 1e-05, %v807
  %809 = vdwg.mxu0
  %v810 = vrsqrt.pop %v808
  %v811 = vmul.f32 %v810, %v808
  %v812 = vmul.f32 %v811, %v810
  %v813 = vmul.f32 0.5, %v812
  %v814 = vsub.f32 1.5, %v813
  %v815 = vmul.f32 %v810, %v814
  %vm816 = vweird.f32 %v808
  %vm817 = vweird.f32 %v810
  %vm818 = vmor %vm816, %vm817
  %v819 = vsel %vm818, %v810, %v815
  %v820 = vperm.slane %v819, 0
  %v821 = vmul.f32 %v779, %v820
  %v822 = vmul.f32 %v780, %v820
  %v823 = vld [vmem:[%s9] sm:$0x1]
  %v825 = vperm.slane %v823, 0
  %v827 = vmul.f32 %v821, %v825
  %v828 = vmul.f32 %v822, %v825
  %v829 = vld [vmem:[%s10] sm:$0x1]
  %v831 = vperm.slane %v829, 0
  %v833 = vadd.f32 %v827, %v831
  %v834 = vadd.f32 %v828, %v831
  %v835 = vmax.f32 %v833, 0.0
  %v836 = vmax.f32 %v834, 0.0
  %v837 = vpack.c.bf16 %v836, %v835
  %v838 = vld [vmem:[%s11] sm:$0xf]
  %v839 = vld [vmem:[%s11 + $0x4] sm:$0xf]
  %v840 = vld [vmem:[%s11 + $0x8] sm:$0xf]
  %v841 = vld [vmem:[%s11 + $0xc] sm:$0xf]
  %v842 = vld [vmem:[%s11 + $0x10] sm:$0xf]
  %v843 = vld [vmem:[%s11 + $0x14] sm:$0xf]
  %v844 = vld [vmem:[%s11 + $0x18] sm:$0xf]
  %v845 = vld [vmem:[%s11 + $0x1c] sm:$0xf]
  %v846 = vld [vmem:[%s11 + $0x20] sm:$0xf]
  %v847 = vld [vmem:[%s11 + $0x24] sm:$0xf]
  %v848 = vld [vmem:[%s11 + $0x28] sm:$0xf]
  %v849 = vld [vmem:[%s11 + $0x2c] sm:$0xf]
  %v850 = vld [vmem:[%s11 + $0x30] sm:$0xf]
  %v851 = vld [vmem:[%s11 + $0x34] sm:$0xf]
  %v852 = vld [vmem:[%s11 + $0x38] sm:$0xf]
  %v853 = vld [vmem:[%s11 + $0x3c] sm:$0xf]
  %v870 = vunpack.c.l.b16 %v838
  %v871 = vunpack.c.l.b16 %v839
  %v872 = vunpack.c.l.b16 %v840
  %v873 = vunpack.c.l.b16 %v841
  %v874 = vunpack.c.l.b16 %v842
  %v875 = vunpack.c.l.b16 %v843
  %v876 = vunpack.c.l.b16 %v844
  %v877 = vunpack.c.l.b16 %v845
  %v878 = vunpack.c.l.b16 %v846
  %v879 = vunpack.c.l.b16 %v847
  %v880 = vunpack.c.l.b16 %v848
  %v881 = vunpack.c.l.b16 %v849
  %v882 = vunpack.c.l.b16 %v850
  %v883 = vunpack.c.l.b16 %v851
  %v884 = vunpack.c.l.b16 %v852
  %v885 = vunpack.c.l.b16 %v853
  %v886 = vpack.c.b16 %v871, %v870
  %v887 = vpack.c.b16 %v873, %v872
  %v888 = vpack.c.b16 %v875, %v874
  %v889 = vpack.c.b16 %v877, %v876
  %v890 = vpack.c.b16 %v879, %v878
  %v891 = vpack.c.b16 %v881, %v880
  %v892 = vpack.c.b16 %v883, %v882
  %v893 = vpack.c.b16 %v885, %v884
  %v895 = vsel %vm124, %v886, 0
  %v898 = vsel %vm124, %v887, 0
  %v901 = vsel %vm124, %v888, 0
  %v904 = vsel %vm124, %v889, 0
  %v907 = vsel %vm124, %v890, 0
  %v910 = vsel %vm124, %v891, 0
  %v913 = vsel %vm124, %v892, 0
  %v916 = vsel %vm124, %v893, 0
  %918 = vmatpush.bf16.msra.mxu0 0
  %919 = vmatpush.bf16.msra.mxu0 0
  %920 = vmatpush.bf16.msra.mxu0 0
  %921 = vmatpush.bf16.msra.mxu0 0
  %922 = vmatpush.bf16.msra.mxu0 0
  %923 = vmatpush.bf16.msra.mxu0 0
  %924 = vmatpush.bf16.msra.mxu0 0
  %925 = vmatpush.bf16.msra.mxu0 %v837
  %926 = vmatmul.bf16.gmra.mxu0 %v895
  %v927 = vpop.f32.mrf.mxu0
  %v928 = vadd.f32 0.0, %v927
  %v929 = vpop.f32.mrf.mxu0
  %v930 = vadd.f32 0.0, %v929
  %931 = vmatmul.bf16.gmra.mxu0 %v898
  %v932 = vpop.f32.mrf.mxu0
  %v933 = vadd.f32 0.0, %v932
  %v934 = vpop.f32.mrf.mxu0
  %v935 = vadd.f32 0.0, %v934
  %936 = vmatmul.bf16.gmra.mxu0 %v901
  %v937 = vpop.f32.mrf.mxu0
  %v938 = vadd.f32 0.0, %v937
  %v939 = vpop.f32.mrf.mxu0
  %v940 = vadd.f32 0.0, %v939
  %941 = vmatmul.bf16.gmra.mxu0 %v904
  %v942 = vpop.f32.mrf.mxu0
  %v943 = vadd.f32 0.0, %v942
  %v944 = vpop.f32.mrf.mxu0
  %v945 = vadd.f32 0.0, %v944
  %946 = vmatmul.bf16.gmra.mxu0 %v907
  %v947 = vpop.f32.mrf.mxu0
  %v948 = vadd.f32 0.0, %v947
  %v949 = vpop.f32.mrf.mxu0
  %v950 = vadd.f32 0.0, %v949
  %951 = vmatmul.bf16.gmra.mxu0 %v910
  %v952 = vpop.f32.mrf.mxu0
  %v953 = vadd.f32 0.0, %v952
  %v954 = vpop.f32.mrf.mxu0
  %v955 = vadd.f32 0.0, %v954
  %956 = vmatmul.bf16.gmra.mxu0 %v913
  %v957 = vpop.f32.mrf.mxu0
  %v958 = vadd.f32 0.0, %v957
  %v959 = vpop.f32.mrf.mxu0
  %v960 = vadd.f32 0.0, %v959
  %961 = vmatmul.bf16.gmra.mxu0 %v916
  %v962 = vpop.f32.mrf.mxu0
  %v963 = vadd.f32 0.0, %v962
  %v964 = vpop.f32.mrf.mxu0
  %v965 = vadd.f32 0.0, %v964
  %966 = vdwg.mxu0
  %v967 = vpack.c.bf16 %v928, %v928
  %v968 = vpack.c.bf16 %v930, %v930
  %v969 = vpack.c.bf16 %v933, %v933
  %v970 = vpack.c.bf16 %v935, %v935
  %v971 = vpack.c.bf16 %v938, %v938
  %v972 = vpack.c.bf16 %v940, %v940
  %v973 = vpack.c.bf16 %v943, %v943
  %v974 = vpack.c.bf16 %v945, %v945
  %v975 = vpack.c.bf16 %v948, %v948
  %v976 = vpack.c.bf16 %v950, %v950
  %v977 = vpack.c.bf16 %v953, %v953
  %v978 = vpack.c.bf16 %v955, %v955
  %v979 = vpack.c.bf16 %v958, %v958
  %v980 = vpack.c.bf16 %v960, %v960
  %v981 = vpack.c.bf16 %v963, %v963
  %v982 = vpack.c.bf16 %v965, %v965
  %v983 = vld [vmem:[%s12] sm:$0xf]
  %v984 = vld [vmem:[%s12 + $0x4] sm:$0xf]
  %v985 = vld [vmem:[%s12 + $0x8] sm:$0xf]
  %v986 = vld [vmem:[%s12 + $0xc] sm:$0xf]
  %v987 = vld [vmem:[%s12 + $0x10] sm:$0xf]
  %v988 = vld [vmem:[%s12 + $0x14] sm:$0xf]
  %v989 = vld [vmem:[%s12 + $0x18] sm:$0xf]
  %v990 = vld [vmem:[%s12 + $0x1c] sm:$0xf]
  %v991 = vld [vmem:[%s12 + $0x20] sm:$0xf]
  %v992 = vld [vmem:[%s12 + $0x24] sm:$0xf]
  %v993 = vld [vmem:[%s12 + $0x28] sm:$0xf]
  %v994 = vld [vmem:[%s12 + $0x2c] sm:$0xf]
  %v995 = vld [vmem:[%s12 + $0x30] sm:$0xf]
  %v996 = vld [vmem:[%s12 + $0x34] sm:$0xf]
  %v997 = vld [vmem:[%s12 + $0x38] sm:$0xf]
  %v998 = vld [vmem:[%s12 + $0x3c] sm:$0xf]
  %s999 = scalar_lea.vmem %s12, 64
  %v1000 = vld [vmem:[%s999] sm:$0xf]
  %v1001 = vld [vmem:[%s999 + $0x4] sm:$0xf]
  %v1002 = vld [vmem:[%s999 + $0x8] sm:$0xf]
  %v1003 = vld [vmem:[%s999 + $0xc] sm:$0xf]
  %v1004 = vld [vmem:[%s999 + $0x10] sm:$0xf]
  %v1005 = vld [vmem:[%s999 + $0x14] sm:$0xf]
  %v1006 = vld [vmem:[%s999 + $0x18] sm:$0xf]
  %v1007 = vld [vmem:[%s999 + $0x1c] sm:$0xf]
  %v1008 = vld [vmem:[%s999 + $0x20] sm:$0xf]
  %v1009 = vld [vmem:[%s999 + $0x24] sm:$0xf]
  %v1010 = vld [vmem:[%s999 + $0x28] sm:$0xf]
  %v1011 = vld [vmem:[%s999 + $0x2c] sm:$0xf]
  %v1012 = vld [vmem:[%s999 + $0x30] sm:$0xf]
  %v1013 = vld [vmem:[%s999 + $0x34] sm:$0xf]
  %v1014 = vld [vmem:[%s999 + $0x38] sm:$0xf]
  %v1015 = vld [vmem:[%s999 + $0x3c] sm:$0xf]
  %v1020 = vunpack.c.l.b16 %v971
  %v1021 = vunpack.c.l.b16 %v972
  %v1022 = vunpack.c.l.b16 %v973
  %v1023 = vunpack.c.l.b16 %v974
  %v1024 = vpack.c.b16 %v1021, %v1020
  %v1025 = vpack.c.b16 %v1023, %v1022
  %v1044 = vunpack.c.l.b16 %v1000
  %v1045 = vunpack.c.l.b16 %v1001
  %v1046 = vunpack.c.l.b16 %v1002
  %v1047 = vunpack.c.l.b16 %v1003
  %v1048 = vunpack.c.l.b16 %v1004
  %v1049 = vunpack.c.l.b16 %v1005
  %v1050 = vunpack.c.l.b16 %v1006
  %v1051 = vunpack.c.l.b16 %v1007
  %v1052 = vunpack.c.l.b16 %v1008
  %v1053 = vunpack.c.l.b16 %v1009
  %v1054 = vunpack.c.l.b16 %v1010
  %v1055 = vunpack.c.l.b16 %v1011
  %v1056 = vunpack.c.l.b16 %v1012
  %v1057 = vunpack.c.l.b16 %v1013
  %v1058 = vunpack.c.l.b16 %v1014
  %v1059 = vunpack.c.l.b16 %v1015
  %v1060 = vpack.c.b16 %v1045, %v1044
  %v1061 = vpack.c.b16 %v1047, %v1046
  %v1062 = vpack.c.b16 %v1049, %v1048
  %v1063 = vpack.c.b16 %v1051, %v1050
  %v1064 = vpack.c.b16 %v1053, %v1052
  %v1065 = vpack.c.b16 %v1055, %v1054
  %v1066 = vpack.c.b16 %v1057, %v1056
  %v1067 = vpack.c.b16 %v1059, %v1058
  %1076 = vmatpush.bf16.msra.mxu0 %v1067
  %1077 = vmatpush.bf16.msra.mxu0 %v1066
  %1078 = vmatpush.bf16.msra.mxu0 %v1065
  %1079 = vmatpush.bf16.msra.mxu0 %v1064
  %1080 = vmatpush.bf16.msra.mxu0 %v1063
  %1081 = vmatpush.bf16.msra.mxu0 %v1062
  %1082 = vmatpush.bf16.msra.mxu0 %v1061
  %1083 = vmatpush.bf16.msra.mxu0 %v1060
  %1084 = vmatmul.bf16.gmra.mxu0 %v1024
  %v1085 = vpop.f32.mrf.mxu0
  %v1086 = vadd.f32 0.0, %v1085
  %v1087 = vpop.f32.mrf.mxu0
  %v1088 = vadd.f32 0.0, %v1087
  %1089 = vmatmul.bf16.gmra.mxu0 %v1025
  %v1090 = vpop.f32.mrf.mxu0
  %v1091 = vadd.f32 0.0, %v1090
  %v1092 = vpop.f32.mrf.mxu0
  %v1093 = vadd.f32 0.0, %v1092
  %1094 = vdwg.mxu0
  %v1099 = vunpack.c.l.b16 %v967
  %v1100 = vunpack.c.l.b16 %v968
  %v1101 = vunpack.c.l.b16 %v969
  %v1102 = vunpack.c.l.b16 %v970
  %v1103 = vpack.c.b16 %v1100, %v1099
  %v1104 = vpack.c.b16 %v1102, %v1101
  %v1123 = vunpack.c.l.b16 %v983
  %v1124 = vunpack.c.l.b16 %v984
  %v1125 = vunpack.c.l.b16 %v985
  %v1126 = vunpack.c.l.b16 %v986
  %v1127 = vunpack.c.l.b16 %v987
  %v1128 = vunpack.c.l.b16 %v988
  %v1129 = vunpack.c.l.b16 %v989
  %v1130 = vunpack.c.l.b16 %v990
  %v1131 = vunpack.c.l.b16 %v991
  %v1132 = vunpack.c.l.b16 %v992
  %v1133 = vunpack.c.l.b16 %v993
  %v1134 = vunpack.c.l.b16 %v994
  %v1135 = vunpack.c.l.b16 %v995
  %v1136 = vunpack.c.l.b16 %v996
  %v1137 = vunpack.c.l.b16 %v997
  %v1138 = vunpack.c.l.b16 %v998
  %v1139 = vpack.c.b16 %v1124, %v1123
  %v1140 = vpack.c.b16 %v1126, %v1125
  %v1141 = vpack.c.b16 %v1128, %v1127
  %v1142 = vpack.c.b16 %v1130, %v1129
  %v1143 = vpack.c.b16 %v1132, %v1131
  %v1144 = vpack.c.b16 %v1134, %v1133
  %v1145 = vpack.c.b16 %v1136, %v1135
  %v1146 = vpack.c.b16 %v1138, %v1137
  %1155 = vmatpush.bf16.msra.mxu0 %v1146
  %1156 = vmatpush.bf16.msra.mxu0 %v1145
  %1157 = vmatpush.bf16.msra.mxu0 %v1144
  %1158 = vmatpush.bf16.msra.mxu0 %v1143
  %1159 = vmatpush.bf16.msra.mxu0 %v1142
  %1160 = vmatpush.bf16.msra.mxu0 %v1141
  %1161 = vmatpush.bf16.msra.mxu0 %v1140
  %1162 = vmatpush.bf16.msra.mxu0 %v1139
  %1163 = vmatmul.bf16.gmra.mxu0 %v1103
  %v1164 = vpop.f32.mrf.mxu0
  %v1165 = vadd.f32 %v1086, %v1164
  %v1166 = vpop.f32.mrf.mxu0
  %v1167 = vadd.f32 %v1088, %v1166
  %1168 = vmatmul.bf16.gmra.mxu0 %v1104
  %v1169 = vpop.f32.mrf.mxu0
  %v1170 = vadd.f32 %v1091, %v1169
  %v1171 = vpop.f32.mrf.mxu0
  %v1172 = vadd.f32 %v1093, %v1171
  %1173 = vdwg.mxu0
  %s1174 = scalar_lea.vmem %s12, 128
  %v1175 = vld [vmem:[%s1174] sm:$0xf]
  %v1176 = vld [vmem:[%s1174 + $0x4] sm:$0xf]
  %v1177 = vld [vmem:[%s1174 + $0x8] sm:$0xf]
  %v1178 = vld [vmem:[%s1174 + $0xc] sm:$0xf]
  %v1179 = vld [vmem:[%s1174 + $0x10] sm:$0xf]
  %v1180 = vld [vmem:[%s1174 + $0x14] sm:$0xf]
  %v1181 = vld [vmem:[%s1174 + $0x18] sm:$0xf]
  %v1182 = vld [vmem:[%s1174 + $0x1c] sm:$0xf]
  %v1183 = vld [vmem:[%s1174 + $0x20] sm:$0xf]
  %v1184 = vld [vmem:[%s1174 + $0x24] sm:$0xf]
  %v1185 = vld [vmem:[%s1174 + $0x28] sm:$0xf]
  %v1186 = vld [vmem:[%s1174 + $0x2c] sm:$0xf]
  %v1187 = vld [vmem:[%s1174 + $0x30] sm:$0xf]
  %v1188 = vld [vmem:[%s1174 + $0x34] sm:$0xf]
  %v1189 = vld [vmem:[%s1174 + $0x38] sm:$0xf]
  %v1190 = vld [vmem:[%s1174 + $0x3c] sm:$0xf]
  %v1195 = vunpack.c.l.b16 %v975
  %v1196 = vunpack.c.l.b16 %v976
  %v1197 = vunpack.c.l.b16 %v977
  %v1198 = vunpack.c.l.b16 %v978
  %v1199 = vpack.c.b16 %v1196, %v1195
  %v1200 = vpack.c.b16 %v1198, %v1197
  %v1219 = vunpack.c.l.b16 %v1175
  %v1220 = vunpack.c.l.b16 %v1176
  %v1221 = vunpack.c.l.b16 %v1177
  %v1222 = vunpack.c.l.b16 %v1178
  %v1223 = vunpack.c.l.b16 %v1179
  %v1224 = vunpack.c.l.b16 %v1180
  %v1225 = vunpack.c.l.b16 %v1181
  %v1226 = vunpack.c.l.b16 %v1182
  %v1227 = vunpack.c.l.b16 %v1183
  %v1228 = vunpack.c.l.b16 %v1184
  %v1229 = vunpack.c.l.b16 %v1185
  %v1230 = vunpack.c.l.b16 %v1186
  %v1231 = vunpack.c.l.b16 %v1187
  %v1232 = vunpack.c.l.b16 %v1188
  %v1233 = vunpack.c.l.b16 %v1189
  %v1234 = vunpack.c.l.b16 %v1190
  %v1235 = vpack.c.b16 %v1220, %v1219
  %v1236 = vpack.c.b16 %v1222, %v1221
  %v1237 = vpack.c.b16 %v1224, %v1223
  %v1238 = vpack.c.b16 %v1226, %v1225
  %v1239 = vpack.c.b16 %v1228, %v1227
  %v1240 = vpack.c.b16 %v1230, %v1229
  %v1241 = vpack.c.b16 %v1232, %v1231
  %v1242 = vpack.c.b16 %v1234, %v1233
  %1251 = vmatpush.bf16.msra.mxu0 %v1242
  %1252 = vmatpush.bf16.msra.mxu0 %v1241
  %1253 = vmatpush.bf16.msra.mxu0 %v1240
  %1254 = vmatpush.bf16.msra.mxu0 %v1239
  %1255 = vmatpush.bf16.msra.mxu0 %v1238
  %1256 = vmatpush.bf16.msra.mxu0 %v1237
  %1257 = vmatpush.bf16.msra.mxu0 %v1236
  %1258 = vmatpush.bf16.msra.mxu0 %v1235
  %1259 = vmatmul.bf16.gmra.mxu0 %v1199
  %v1260 = vpop.f32.mrf.mxu0
  %v1261 = vadd.f32 0.0, %v1260
  %v1262 = vpop.f32.mrf.mxu0
  %v1263 = vadd.f32 0.0, %v1262
  %1264 = vmatmul.bf16.gmra.mxu0 %v1200
  %v1265 = vpop.f32.mrf.mxu0
  %v1266 = vadd.f32 0.0, %v1265
  %v1267 = vpop.f32.mrf.mxu0
  %v1268 = vadd.f32 0.0, %v1267
  %1269 = vdwg.mxu0
  %v1270 = vadd.f32 %v1165, %v1261
  %v1271 = vadd.f32 %v1167, %v1263
  %v1272 = vadd.f32 %v1170, %v1266
  %v1273 = vadd.f32 %v1172, %v1268
  %s1274 = scalar_lea.vmem %s12, 192
  %v1275 = vld [vmem:[%s1274] sm:$0xf]
  %v1276 = vld [vmem:[%s1274 + $0x4] sm:$0xf]
  %v1277 = vld [vmem:[%s1274 + $0x8] sm:$0xf]
  %v1278 = vld [vmem:[%s1274 + $0xc] sm:$0xf]
  %v1279 = vld [vmem:[%s1274 + $0x10] sm:$0xf]
  %v1280 = vld [vmem:[%s1274 + $0x14] sm:$0xf]
  %v1281 = vld [vmem:[%s1274 + $0x18] sm:$0xf]
  %v1282 = vld [vmem:[%s1274 + $0x1c] sm:$0xf]
  %v1283 = vld [vmem:[%s1274 + $0x20] sm:$0xf]
  %v1284 = vld [vmem:[%s1274 + $0x24] sm:$0xf]
  %v1285 = vld [vmem:[%s1274 + $0x28] sm:$0xf]
  %v1286 = vld [vmem:[%s1274 + $0x2c] sm:$0xf]
  %v1287 = vld [vmem:[%s1274 + $0x30] sm:$0xf]
  %v1288 = vld [vmem:[%s1274 + $0x34] sm:$0xf]
  %v1289 = vld [vmem:[%s1274 + $0x38] sm:$0xf]
  %v1290 = vld [vmem:[%s1274 + $0x3c] sm:$0xf]
  %v1295 = vunpack.c.l.b16 %v979
  %v1296 = vunpack.c.l.b16 %v980
  %v1297 = vunpack.c.l.b16 %v981
  %v1298 = vunpack.c.l.b16 %v982
  %v1299 = vpack.c.b16 %v1296, %v1295
  %v1300 = vpack.c.b16 %v1298, %v1297
  %v1319 = vunpack.c.l.b16 %v1275
  %v1320 = vunpack.c.l.b16 %v1276
  %v1321 = vunpack.c.l.b16 %v1277
  %v1322 = vunpack.c.l.b16 %v1278
  %v1323 = vunpack.c.l.b16 %v1279
  %v1324 = vunpack.c.l.b16 %v1280
  %v1325 = vunpack.c.l.b16 %v1281
  %v1326 = vunpack.c.l.b16 %v1282
  %v1327 = vunpack.c.l.b16 %v1283
  %v1328 = vunpack.c.l.b16 %v1284
  %v1329 = vunpack.c.l.b16 %v1285
  %v1330 = vunpack.c.l.b16 %v1286
  %v1331 = vunpack.c.l.b16 %v1287
  %v1332 = vunpack.c.l.b16 %v1288
  %v1333 = vunpack.c.l.b16 %v1289
  %v1334 = vunpack.c.l.b16 %v1290
  %v1335 = vpack.c.b16 %v1320, %v1319
  %v1336 = vpack.c.b16 %v1322, %v1321
  %v1337 = vpack.c.b16 %v1324, %v1323
  %v1338 = vpack.c.b16 %v1326, %v1325
  %v1339 = vpack.c.b16 %v1328, %v1327
  %v1340 = vpack.c.b16 %v1330, %v1329
  %v1341 = vpack.c.b16 %v1332, %v1331
  %v1342 = vpack.c.b16 %v1334, %v1333
  %1351 = vmatpush.bf16.msra.mxu0 %v1342
  %1352 = vmatpush.bf16.msra.mxu0 %v1341
  %1353 = vmatpush.bf16.msra.mxu0 %v1340
  %1354 = vmatpush.bf16.msra.mxu0 %v1339
  %1355 = vmatpush.bf16.msra.mxu0 %v1338
  %1356 = vmatpush.bf16.msra.mxu0 %v1337
  %1357 = vmatpush.bf16.msra.mxu0 %v1336
  %1358 = vmatpush.bf16.msra.mxu0 %v1335
  %1359 = vmatmul.bf16.gmra.mxu0 %v1299
  %v1360 = vpop.f32.mrf.mxu0
  %v1361 = vadd.f32 0.0, %v1360
  %v1362 = vpop.f32.mrf.mxu0
  %v1363 = vadd.f32 0.0, %v1362
  %1364 = vmatmul.bf16.gmra.mxu0 %v1300
  %v1365 = vpop.f32.mrf.mxu0
  %v1366 = vadd.f32 0.0, %v1365
  %v1367 = vpop.f32.mrf.mxu0
  %v1368 = vadd.f32 0.0, %v1367
  %1369 = vdwg.mxu0
  %v1370 = vadd.f32 %v1270, %v1361
  %v1371 = vadd.f32 %v1271, %v1363
  %v1372 = vadd.f32 %v1272, %v1366
  %v1373 = vadd.f32 %v1273, %v1368
  %v1374 = vadd.f32 %v1370, %v1371
  %v1375 = vadd.f32 %v1374, %v1372
  %v1376 = vadd.f32 %v1375, %v1373
  %v1377 = vrot.slane %v1376, 4
  %v1378 = vadd.f32 %v1376, %v1377
  %v1379 = vrot.slane %v1378, 2
  %v1380 = vadd.f32 %v1378, %v1379
  %v1381 = vrot.slane %v1380, 1
  %v1382 = vadd.f32 %v1380, %v1381
  %v1383 = vld [vmem:[%s13] sm:$0xff]
  %v1384 = vld [vmem:[%s13 + $0x8] sm:$0xff]
  %v1385 = vld [vmem:[%s13 + $0x10] sm:$0xff]
  %v1386 = vld [vmem:[%s13 + $0x18] sm:$0xff]
  %v1387 = vld [vmem:[%s13 + $0x20] sm:$0xff]
  %v1388 = vld [vmem:[%s13 + $0x28] sm:$0xff]
  %v1389 = vld [vmem:[%s13 + $0x30] sm:$0xff]
  %v1390 = vld [vmem:[%s13 + $0x38] sm:$0xff]
  %v1391 = vld [vmem:[%s13 + $0x40] sm:$0xff]
  %v1392 = vld [vmem:[%s13 + $0x48] sm:$0xff]
  %v1393 = vld [vmem:[%s13 + $0x50] sm:$0xff]
  %v1394 = vld [vmem:[%s13 + $0x58] sm:$0xff]
  %v1395 = vld [vmem:[%s13 + $0x60] sm:$0xff]
  %v1396 = vld [vmem:[%s13 + $0x68] sm:$0xff]
  %v1397 = vld [vmem:[%s13 + $0x70] sm:$0xff]
  %v1398 = vld [vmem:[%s13 + $0x78] sm:$0xff]
  %1399 = vmatpush.msra.mxu0 %v1398
  %1400 = vmatpush.msra.mxu0 %v1397
  %1401 = vmatpush.msra.mxu0 %v1396
  %1402 = vmatpush.msra.mxu0 %v1395
  %1403 = vmatpush.msra.mxu0 %v1394
  %1404 = vmatpush.msra.mxu0 %v1393
  %1405 = vmatpush.msra.mxu0 %v1392
  %1406 = vmatpush.msra.mxu0 %v1391
  %1407 = vmatpush.msra.mxu0 %v1390
  %1408 = vmatpush.msra.mxu0 %v1389
  %1409 = vmatpush.msra.mxu0 %v1388
  %1410 = vmatpush.msra.mxu0 %v1387
  %1411 = vmatpush.msra.mxu0 %v1386
  %1412 = vmatpush.msra.mxu0 %v1385
  %1413 = vmatpush.msra.mxu0 %v1384
  %1414 = vmatpush.msra.mxu0 %v1383
  %1415 = vmatmul.f32.gmra.mxu0 %v1382
  %v1416 = vpop.f32.mrf.mxu0
  %v1417 = vadd.f32 0.0, %v1416
  %1418 = vdwg.mxu0
  %v1419 = vperm.slane %v1417, 0
  %v1420 = vsub.f32 %v1370, %v1419
  %v1421 = vsub.f32 %v1371, %v1419
  %v1422 = vsub.f32 %v1372, %v1419
  %v1423 = vsub.f32 %v1373, %v1419
  %v1424 = vmul.f32 %v1420, %v1420
  %v1425 = vmul.f32 %v1421, %v1421
  %v1426 = vmul.f32 %v1422, %v1422
  %v1427 = vmul.f32 %v1423, %v1423
  %v1428 = vadd.f32 %v1424, %v1425
  %v1429 = vadd.f32 %v1428, %v1426
  %v1430 = vadd.f32 %v1429, %v1427
  %v1431 = vrot.slane %v1430, 4
  %v1432 = vadd.f32 %v1430, %v1431
  %v1433 = vrot.slane %v1432, 2
  %v1434 = vadd.f32 %v1432, %v1433
  %v1435 = vrot.slane %v1434, 1
  %v1436 = vadd.f32 %v1434, %v1435
  %1437 = vmatpush.msra.mxu0 %v1398
  %1438 = vmatpush.msra.mxu0 %v1397
  %1439 = vmatpush.msra.mxu0 %v1396
  %1440 = vmatpush.msra.mxu0 %v1395
  %1441 = vmatpush.msra.mxu0 %v1394
  %1442 = vmatpush.msra.mxu0 %v1393
  %1443 = vmatpush.msra.mxu0 %v1392
  %1444 = vmatpush.msra.mxu0 %v1391
  %1445 = vmatpush.msra.mxu0 %v1390
  %1446 = vmatpush.msra.mxu0 %v1389
  %1447 = vmatpush.msra.mxu0 %v1388
  %1448 = vmatpush.msra.mxu0 %v1387
  %1449 = vmatpush.msra.mxu0 %v1386
  %1450 = vmatpush.msra.mxu0 %v1385
  %1451 = vmatpush.msra.mxu0 %v1384
  %1452 = vmatpush.msra.mxu0 %v1383
  %1453 = vmatmul.f32.gmra.mxu0 %v1436
  %v1454 = vpop.f32.mrf.mxu0
  %v1455 = vadd.f32 1e-05, %v1454
  %1456 = vdwg.mxu0
  %v1457 = vrsqrt.pop %v1455
  %v1458 = vmul.f32 %v1457, %v1455
  %v1459 = vmul.f32 %v1458, %v1457
  %v1460 = vmul.f32 0.5, %v1459
  %v1461 = vsub.f32 1.5, %v1460
  %v1462 = vmul.f32 %v1457, %v1461
  %vm1463 = vweird.f32 %v1455
  %vm1464 = vweird.f32 %v1457
  %vm1465 = vmor %vm1463, %vm1464
  %v1466 = vsel %vm1465, %v1457, %v1462
  %v1467 = vperm.slane %v1466, 0
  %v1468 = vmul.f32 %v1420, %v1467
  %v1469 = vmul.f32 %v1421, %v1467
  %v1470 = vmul.f32 %v1422, %v1467
  %v1471 = vmul.f32 %v1423, %v1467
  %v1472 = vld [vmem:[%s14] sm:$0x1]
  %v1474 = vperm.slane %v1472, 0
  %v1476 = vmul.f32 %v1468, %v1474
  %v1477 = vmul.f32 %v1469, %v1474
  %v1478 = vmul.f32 %v1470, %v1474
  %v1479 = vmul.f32 %v1471, %v1474
  %v1480 = vld [vmem:[%s15] sm:$0x1]
  %v1482 = vperm.slane %v1480, 0
  %v1484 = vadd.f32 %v1476, %v1482
  %v1485 = vadd.f32 %v1477, %v1482
  %v1486 = vadd.f32 %v1478, %v1482
  %v1487 = vadd.f32 %v1479, %v1482
  %v1488 = vmax.f32 %v1484, 0.0
  %v1489 = vmax.f32 %v1485, 0.0
  %v1490 = vmax.f32 %v1486, 0.0
  %v1491 = vmax.f32 %v1487, 0.0
  %v1492 = vpack.c.bf16 %v1489, %v1488
  %v1493 = vpack.c.bf16 %v1491, %v1490
  %v1494 = vld [vmem:[%s16] sm:$0xf]
  %v1495 = vld [vmem:[%s16 + $0x4] sm:$0xf]
  %v1496 = vld [vmem:[%s16 + $0x8] sm:$0xf]
  %v1497 = vld [vmem:[%s16 + $0xc] sm:$0xf]
  %v1498 = vld [vmem:[%s16 + $0x10] sm:$0xf]
  %v1499 = vld [vmem:[%s16 + $0x14] sm:$0xf]
  %v1500 = vld [vmem:[%s16 + $0x18] sm:$0xf]
  %v1501 = vld [vmem:[%s16 + $0x1c] sm:$0xf]
  %v1502 = vld [vmem:[%s16 + $0x20] sm:$0xf]
  %v1503 = vld [vmem:[%s16 + $0x24] sm:$0xf]
  %v1504 = vld [vmem:[%s16 + $0x28] sm:$0xf]
  %v1505 = vld [vmem:[%s16 + $0x2c] sm:$0xf]
  %v1506 = vld [vmem:[%s16 + $0x30] sm:$0xf]
  %v1507 = vld [vmem:[%s16 + $0x34] sm:$0xf]
  %v1508 = vld [vmem:[%s16 + $0x38] sm:$0xf]
  %v1509 = vld [vmem:[%s16 + $0x3c] sm:$0xf]
  %v1510 = vld [vmem:[%s16 + $0x40] sm:$0xf]
  %v1511 = vld [vmem:[%s16 + $0x44] sm:$0xf]
  %v1512 = vld [vmem:[%s16 + $0x48] sm:$0xf]
  %v1513 = vld [vmem:[%s16 + $0x4c] sm:$0xf]
  %v1514 = vld [vmem:[%s16 + $0x50] sm:$0xf]
  %v1515 = vld [vmem:[%s16 + $0x54] sm:$0xf]
  %v1516 = vld [vmem:[%s16 + $0x58] sm:$0xf]
  %v1517 = vld [vmem:[%s16 + $0x5c] sm:$0xf]
  %v1518 = vld [vmem:[%s16 + $0x60] sm:$0xf]
  %v1519 = vld [vmem:[%s16 + $0x64] sm:$0xf]
  %v1520 = vld [vmem:[%s16 + $0x68] sm:$0xf]
  %v1521 = vld [vmem:[%s16 + $0x6c] sm:$0xf]
  %v1522 = vld [vmem:[%s16 + $0x70] sm:$0xf]
  %v1523 = vld [vmem:[%s16 + $0x74] sm:$0xf]
  %v1524 = vld [vmem:[%s16 + $0x78] sm:$0xf]
  %v1525 = vld [vmem:[%s16 + $0x7c] sm:$0xf]
  %v1558 = vunpack.c.l.b16 %v1494
  %v1559 = vunpack.c.l.b16 %v1495
  %v1560 = vunpack.c.l.b16 %v1496
  %v1561 = vunpack.c.l.b16 %v1497
  %v1562 = vunpack.c.l.b16 %v1498
  %v1563 = vunpack.c.l.b16 %v1499
  %v1564 = vunpack.c.l.b16 %v1500
  %v1565 = vunpack.c.l.b16 %v1501
  %v1566 = vunpack.c.l.b16 %v1502
  %v1567 = vunpack.c.l.b16 %v1503
  %v1568 = vunpack.c.l.b16 %v1504
  %v1569 = vunpack.c.l.b16 %v1505
  %v1570 = vunpack.c.l.b16 %v1506
  %v1571 = vunpack.c.l.b16 %v1507
  %v1572 = vunpack.c.l.b16 %v1508
  %v1573 = vunpack.c.l.b16 %v1509
  %v1574 = vunpack.c.l.b16 %v1510
  %v1575 = vunpack.c.l.b16 %v1511
  %v1576 = vunpack.c.l.b16 %v1512
  %v1577 = vunpack.c.l.b16 %v1513
  %v1578 = vunpack.c.l.b16 %v1514
  %v1579 = vunpack.c.l.b16 %v1515
  %v1580 = vunpack.c.l.b16 %v1516
  %v1581 = vunpack.c.l.b16 %v1517
  %v1582 = vunpack.c.l.b16 %v1518
  %v1583 = vunpack.c.l.b16 %v1519
  %v1584 = vunpack.c.l.b16 %v1520
  %v1585 = vunpack.c.l.b16 %v1521
  %v1586 = vunpack.c.l.b16 %v1522
  %v1587 = vunpack.c.l.b16 %v1523
  %v1588 = vunpack.c.l.b16 %v1524
  %v1589 = vunpack.c.l.b16 %v1525
  %v1590 = vpack.c.b16 %v1559, %v1558
  %v1591 = vpack.c.b16 %v1561, %v1560
  %v1592 = vpack.c.b16 %v1563, %v1562
  %v1593 = vpack.c.b16 %v1565, %v1564
  %v1594 = vpack.c.b16 %v1567, %v1566
  %v1595 = vpack.c.b16 %v1569, %v1568
  %v1596 = vpack.c.b16 %v1571, %v1570
  %v1597 = vpack.c.b16 %v1573, %v1572
  %v1598 = vpack.c.b16 %v1575, %v1574
  %v1599 = vpack.c.b16 %v1577, %v1576
  %v1600 = vpack.c.b16 %v1579, %v1578
  %v1601 = vpack.c.b16 %v1581, %v1580
  %v1602 = vpack.c.b16 %v1583, %v1582
  %v1603 = vpack.c.b16 %v1585, %v1584
  %v1604 = vpack.c.b16 %v1587, %v1586
  %v1605 = vpack.c.b16 %v1589, %v1588
  %vm1606 = vcmask 261120
  %v1608 = vsel %vm1606, %v1590, 0
  %v1611 = vsel %vm1606, %v1591, 0
  %v1614 = vsel %vm1606, %v1592, 0
  %v1617 = vsel %vm1606, %v1593, 0
  %v1620 = vsel %vm1606, %v1594, 0
  %v1623 = vsel %vm1606, %v1595, 0
  %v1626 = vsel %vm1606, %v1596, 0
  %v1629 = vsel %vm1606, %v1597, 0
  %v1632 = vsel %vm1606, %v1598, 0
  %v1635 = vsel %vm1606, %v1599, 0
  %v1638 = vsel %vm1606, %v1600, 0
  %v1641 = vsel %vm1606, %v1601, 0
  %v1644 = vsel %vm1606, %v1602, 0
  %v1647 = vsel %vm1606, %v1603, 0
  %v1650 = vsel %vm1606, %v1604, 0
  %v1653 = vsel %vm1606, %v1605, 0
  %1655 = vmatpush.bf16.msra.mxu0 0
  %1656 = vmatpush.bf16.msra.mxu0 0
  %1657 = vmatpush.bf16.msra.mxu0 0
  %1658 = vmatpush.bf16.msra.mxu0 0
  %1659 = vmatpush.bf16.msra.mxu0 0
  %1660 = vmatpush.bf16.msra.mxu0 0
  %1661 = vmatpush.bf16.msra.mxu0 %v1493
  %1662 = vmatpush.bf16.msra.mxu0 %v1492
  %1663 = vmatmul.bf16.gmra.mxu0 %v1608
  %v1664 = vpop.f32.mrf.mxu0
  %v1665 = vadd.f32 0.0, %v1664
  %v1666 = vpop.f32.mrf.mxu0
  %v1667 = vadd.f32 0.0, %v1666
  %1668 = vmatmul.bf16.gmra.mxu0 %v1611
  %v1669 = vpop.f32.mrf.mxu0
  %v1670 = vadd.f32 0.0, %v1669
  %v1671 = vpop.f32.mrf.mxu0
  %v1672 = vadd.f32 0.0, %v1671
  %1673 = vmatmul.bf16.gmra.mxu0 %v1614
  %v1674 = vpop.f32.mrf.mxu0
  %v1675 = vadd.f32 0.0, %v1674
  %v1676 = vpop.f32.mrf.mxu0
  %v1677 = vadd.f32 0.0, %v1676
  %1678 = vmatmul.bf16.gmra.mxu0 %v1617
  %v1679 = vpop.f32.mrf.mxu0
  %v1680 = vadd.f32 0.0, %v1679
  %v1681 = vpop.f32.mrf.mxu0
  %v1682 = vadd.f32 0.0, %v1681
  %1683 = vmatmul.bf16.gmra.mxu0 %v1620
  %v1684 = vpop.f32.mrf.mxu0
  %v1685 = vadd.f32 0.0, %v1684
  %v1686 = vpop.f32.mrf.mxu0
  %v1687 = vadd.f32 0.0, %v1686
  %1688 = vmatmul.bf16.gmra.mxu0 %v1623
  %v1689 = vpop.f32.mrf.mxu0
  %v1690 = vadd.f32 0.0, %v1689
  %v1691 = vpop.f32.mrf.mxu0
  %v1692 = vadd.f32 0.0, %v1691
  %1693 = vmatmul.bf16.gmra.mxu0 %v1626
  %v1694 = vpop.f32.mrf.mxu0
  %v1695 = vadd.f32 0.0, %v1694
  %v1696 = vpop.f32.mrf.mxu0
  %v1697 = vadd.f32 0.0, %v1696
  %1698 = vmatmul.bf16.gmra.mxu0 %v1629
  %v1699 = vpop.f32.mrf.mxu0
  %v1700 = vadd.f32 0.0, %v1699
  %v1701 = vpop.f32.mrf.mxu0
  %v1702 = vadd.f32 0.0, %v1701
  %1703 = vmatmul.bf16.gmra.mxu0 %v1632
  %v1704 = vpop.f32.mrf.mxu0
  %v1705 = vadd.f32 0.0, %v1704
  %v1706 = vpop.f32.mrf.mxu0
  %v1707 = vadd.f32 0.0, %v1706
  %1708 = vmatmul.bf16.gmra.mxu0 %v1635
  %v1709 = vpop.f32.mrf.mxu0
  %v1710 = vadd.f32 0.0, %v1709
  %v1711 = vpop.f32.mrf.mxu0
  %v1712 = vadd.f32 0.0, %v1711
  %1713 = vmatmul.bf16.gmra.mxu0 %v1638
  %v1714 = vpop.f32.mrf.mxu0
  %v1715 = vadd.f32 0.0, %v1714
  %v1716 = vpop.f32.mrf.mxu0
  %v1717 = vadd.f32 0.0, %v1716
  %1718 = vmatmul.bf16.gmra.mxu0 %v1641
  %v1719 = vpop.f32.mrf.mxu0
  %v1720 = vadd.f32 0.0, %v1719
  %v1721 = vpop.f32.mrf.mxu0
  %v1722 = vadd.f32 0.0, %v1721
  %1723 = vmatmul.bf16.gmra.mxu0 %v1644
  %v1724 = vpop.f32.mrf.mxu0
  %v1725 = vadd.f32 0.0, %v1724
  %v1726 = vpop.f32.mrf.mxu0
  %v1727 = vadd.f32 0.0, %v1726
  %1728 = vmatmul.bf16.gmra.mxu0 %v1647
  %v1729 = vpop.f32.mrf.mxu0
  %v1730 = vadd.f32 0.0, %v1729
  %v1731 = vpop.f32.mrf.mxu0
  %v1732 = vadd.f32 0.0, %v1731
  %1733 = vmatmul.bf16.gmra.mxu0 %v1650
  %v1734 = vpop.f32.mrf.mxu0
  %v1735 = vadd.f32 0.0, %v1734
  %v1736 = vpop.f32.mrf.mxu0
  %v1737 = vadd.f32 0.0, %v1736
  %1738 = vmatmul.bf16.gmra.mxu0 %v1653
  %v1739 = vpop.f32.mrf.mxu0
  %v1740 = vadd.f32 0.0, %v1739
  %v1741 = vpop.f32.mrf.mxu0
  %v1742 = vadd.f32 0.0, %v1741
  %1743 = vdwg.mxu0
  %v1744 = vpack.c.bf16 %v1665, %v1665
  %v1745 = vpack.c.bf16 %v1667, %v1667
  %v1746 = vpack.c.bf16 %v1670, %v1670
  %v1747 = vpack.c.bf16 %v1672, %v1672
  %v1748 = vpack.c.bf16 %v1675, %v1675
  %v1749 = vpack.c.bf16 %v1677, %v1677
  %v1750 = vpack.c.bf16 %v1680, %v1680
  %v1751 = vpack.c.bf16 %v1682, %v1682
  %v1752 = vpack.c.bf16 %v1685, %v1685
  %v1753 = vpack.c.bf16 %v1687, %v1687
  %v1754 = vpack.c.bf16 %v1690, %v1690
  %v1755 = vpack.c.bf16 %v1692, %v1692
  %v1756 = vpack.c.bf16 %v1695, %v1695
  %v1757 = vpack.c.bf16 %v1697, %v1697
  %v1758 = vpack.c.bf16 %v1700, %v1700
  %v1759 = vpack.c.bf16 %v1702, %v1702
  %v1760 = vpack.c.bf16 %v1705, %v1705
  %v1761 = vpack.c.bf16 %v1707, %v1707
  %v1762 = vpack.c.bf16 %v1710, %v1710
  %v1763 = vpack.c.bf16 %v1712, %v1712
  %v1764 = vpack.c.bf16 %v1715, %v1715
  %v1765 = vpack.c.bf16 %v1717, %v1717
  %v1766 = vpack.c.bf16 %v1720, %v1720
  %v1767 = vpack.c.bf16 %v1722, %v1722
  %v1768 = vpack.c.bf16 %v1725, %v1725
  %v1769 = vpack.c.bf16 %v1727, %v1727
  %v1770 = vpack.c.bf16 %v1730, %v1730
  %v1771 = vpack.c.bf16 %v1732, %v1732
  %v1772 = vpack.c.bf16 %v1735, %v1735
  %v1773 = vpack.c.bf16 %v1737, %v1737
  %v1774 = vpack.c.bf16 %v1740, %v1740
  %v1775 = vpack.c.bf16 %v1742, %v1742
  %v1776 = vld [vmem:[%s17] sm:$0xf]
  %v1777 = vld [vmem:[%s17 + $0x4] sm:$0xf]
  %v1778 = vld [vmem:[%s17 + $0x8] sm:$0xf]
  %v1779 = vld [vmem:[%s17 + $0xc] sm:$0xf]
  %v1780 = vld [vmem:[%s17 + $0x10] sm:$0xf]
  %v1781 = vld [vmem:[%s17 + $0x14] sm:$0xf]
  %v1782 = vld [vmem:[%s17 + $0x18] sm:$0xf]
  %v1783 = vld [vmem:[%s17 + $0x1c] sm:$0xf]
  %v1784 = vld [vmem:[%s17 + $0x20] sm:$0xf]
  %v1785 = vld [vmem:[%s17 + $0x24] sm:$0xf]
  %v1786 = vld [vmem:[%s17 + $0x28] sm:$0xf]
  %v1787 = vld [vmem:[%s17 + $0x2c] sm:$0xf]
  %v1788 = vld [vmem:[%s17 + $0x30] sm:$0xf]
  %v1789 = vld [vmem:[%s17 + $0x34] sm:$0xf]
  %v1790 = vld [vmem:[%s17 + $0x38] sm:$0xf]
  %v1791 = vld [vmem:[%s17 + $0x3c] sm:$0xf]
  %s1792 = scalar_lea.vmem %s17, 64
  %v1793 = vld [vmem:[%s1792] sm:$0xf]
  %v1794 = vld [vmem:[%s1792 + $0x4] sm:$0xf]
  %v1795 = vld [vmem:[%s1792 + $0x8] sm:$0xf]
  %v1796 = vld [vmem:[%s1792 + $0xc] sm:$0xf]
  %v1797 = vld [vmem:[%s1792 + $0x10] sm:$0xf]
  %v1798 = vld [vmem:[%s1792 + $0x14] sm:$0xf]
  %v1799 = vld [vmem:[%s1792 + $0x18] sm:$0xf]
  %v1800 = vld [vmem:[%s1792 + $0x1c] sm:$0xf]
  %v1801 = vld [vmem:[%s1792 + $0x20] sm:$0xf]
  %v1802 = vld [vmem:[%s1792 + $0x24] sm:$0xf]
  %v1803 = vld [vmem:[%s1792 + $0x28] sm:$0xf]
  %v1804 = vld [vmem:[%s1792 + $0x2c] sm:$0xf]
  %v1805 = vld [vmem:[%s1792 + $0x30] sm:$0xf]
  %v1806 = vld [vmem:[%s1792 + $0x34] sm:$0xf]
  %v1807 = vld [vmem:[%s1792 + $0x38] sm:$0xf]
  %v1808 = vld [vmem:[%s1792 + $0x3c] sm:$0xf]
  %v1817 = vunpack.c.l.b16 %v1752
  %v1818 = vunpack.c.l.b16 %v1753
  %v1819 = vunpack.c.l.b16 %v1754
  %v1820 = vunpack.c.l.b16 %v1755
  %v1821 = vunpack.c.l.b16 %v1756
  %v1822 = vunpack.c.l.b16 %v1757
  %v1823 = vunpack.c.l.b16 %v1758
  %v1824 = vunpack.c.l.b16 %v1759
  %v1825 = vpack.c.b16 %v1818, %v1817
  %v1826 = vpack.c.b16 %v1820, %v1819
  %v1827 = vpack.c.b16 %v1822, %v1821
  %v1828 = vpack.c.b16 %v1824, %v1823
  %v1849 = vunpack.c.l.b16 %v1793
  %v1850 = vunpack.c.l.b16 %v1794
  %v1851 = vunpack.c.l.b16 %v1795
  %v1852 = vunpack.c.l.b16 %v1796
  %v1853 = vunpack.c.l.b16 %v1797
  %v1854 = vunpack.c.l.b16 %v1798
  %v1855 = vunpack.c.l.b16 %v1799
  %v1856 = vunpack.c.l.b16 %v1800
  %v1857 = vunpack.c.l.b16 %v1801
  %v1858 = vunpack.c.l.b16 %v1802
  %v1859 = vunpack.c.l.b16 %v1803
  %v1860 = vunpack.c.l.b16 %v1804
  %v1861 = vunpack.c.l.b16 %v1805
  %v1862 = vunpack.c.l.b16 %v1806
  %v1863 = vunpack.c.l.b16 %v1807
  %v1864 = vunpack.c.l.b16 %v1808
  %v1865 = vpack.c.b16 %v1850, %v1849
  %v1866 = vpack.c.b16 %v1852, %v1851
  %v1867 = vpack.c.b16 %v1854, %v1853
  %v1868 = vpack.c.b16 %v1856, %v1855
  %v1869 = vpack.c.b16 %v1858, %v1857
  %v1870 = vpack.c.b16 %v1860, %v1859
  %v1871 = vpack.c.b16 %v1862, %v1861
  %v1872 = vpack.c.b16 %v1864, %v1863
  %1881 = vmatpush.bf16.msra.mxu0 %v1872
  %1882 = vmatpush.bf16.msra.mxu0 %v1871
  %1883 = vmatpush.bf16.msra.mxu0 %v1870
  %1884 = vmatpush.bf16.msra.mxu0 %v1869
  %1885 = vmatpush.bf16.msra.mxu0 %v1868
  %1886 = vmatpush.bf16.msra.mxu0 %v1867
  %1887 = vmatpush.bf16.msra.mxu0 %v1866
  %1888 = vmatpush.bf16.msra.mxu0 %v1865
  %1889 = vmatmul.bf16.gmra.mxu0 %v1825
  %v1890 = vpop.f32.mrf.mxu0
  %v1891 = vadd.f32 0.0, %v1890
  %v1892 = vpop.f32.mrf.mxu0
  %v1893 = vadd.f32 0.0, %v1892
  %1894 = vmatmul.bf16.gmra.mxu0 %v1826
  %v1895 = vpop.f32.mrf.mxu0
  %v1896 = vadd.f32 0.0, %v1895
  %v1897 = vpop.f32.mrf.mxu0
  %v1898 = vadd.f32 0.0, %v1897
  %1899 = vmatmul.bf16.gmra.mxu0 %v1827
  %v1900 = vpop.f32.mrf.mxu0
  %v1901 = vadd.f32 0.0, %v1900
  %v1902 = vpop.f32.mrf.mxu0
  %v1903 = vadd.f32 0.0, %v1902
  %1904 = vmatmul.bf16.gmra.mxu0 %v1828
  %v1905 = vpop.f32.mrf.mxu0
  %v1906 = vadd.f32 0.0, %v1905
  %v1907 = vpop.f32.mrf.mxu0
  %v1908 = vadd.f32 0.0, %v1907
  %1909 = vdwg.mxu0
  %v1918 = vunpack.c.l.b16 %v1744
  %v1919 = vunpack.c.l.b16 %v1745
  %v1920 = vunpack.c.l.b16 %v1746
  %v1921 = vunpack.c.l.b16 %v1747
  %v1922 = vunpack.c.l.b16 %v1748
  %v1923 = vunpack.c.l.b16 %v1749
  %v1924 = vunpack.c.l.b16 %v1750
  %v1925 = vunpack.c.l.b16 %v1751
  %v1926 = vpack.c.b16 %v1919, %v1918
  %v1927 = vpack.c.b16 %v1921, %v1920
  %v1928 = vpack.c.b16 %v1923, %v1922
  %v1929 = vpack.c.b16 %v1925, %v1924
  %v1950 = vunpack.c.l.b16 %v1776
  %v1951 = vunpack.c.l.b16 %v1777
  %v1952 = vunpack.c.l.b16 %v1778
  %v1953 = vunpack.c.l.b16 %v1779
  %v1954 = vunpack.c.l.b16 %v1780
  %v1955 = vunpack.c.l.b16 %v1781
  %v1956 = vunpack.c.l.b16 %v1782
  %v1957 = vunpack.c.l.b16 %v1783
  %v1958 = vunpack.c.l.b16 %v1784
  %v1959 = vunpack.c.l.b16 %v1785
  %v1960 = vunpack.c.l.b16 %v1786
  %v1961 = vunpack.c.l.b16 %v1787
  %v1962 = vunpack.c.l.b16 %v1788
  %v1963 = vunpack.c.l.b16 %v1789
  %v1964 = vunpack.c.l.b16 %v1790
  %v1965 = vunpack.c.l.b16 %v1791
  %v1966 = vpack.c.b16 %v1951, %v1950
  %v1967 = vpack.c.b16 %v1953, %v1952
  %v1968 = vpack.c.b16 %v1955, %v1954
  %v1969 = vpack.c.b16 %v1957, %v1956
  %v1970 = vpack.c.b16 %v1959, %v1958
  %v1971 = vpack.c.b16 %v1961, %v1960
  %v1972 = vpack.c.b16 %v1963, %v1962
  %v1973 = vpack.c.b16 %v1965, %v1964
  %1982 = vmatpush.bf16.msra.mxu0 %v1973
  %1983 = vmatpush.bf16.msra.mxu0 %v1972
  %1984 = vmatpush.bf16.msra.mxu0 %v1971
  %1985 = vmatpush.bf16.msra.mxu0 %v1970
  %1986 = vmatpush.bf16.msra.mxu0 %v1969
  %1987 = vmatpush.bf16.msra.mxu0 %v1968
  %1988 = vmatpush.bf16.msra.mxu0 %v1967
  %1989 = vmatpush.bf16.msra.mxu0 %v1966
  %1990 = vmatmul.bf16.gmra.mxu0 %v1926
  %v1991 = vpop.f32.mrf.mxu0
  %v1992 = vadd.f32 %v1891, %v1991
  %v1993 = vpop.f32.mrf.mxu0
  %v1994 = vadd.f32 %v1893, %v1993
  %1995 = vmatmul.bf16.gmra.mxu0 %v1927
  %v1996 = vpop.f32.mrf.mxu0
  %v1997 = vadd.f32 %v1896, %v1996
  %v1998 = vpop.f32.mrf.mxu0
  %v1999 = vadd.f32 %v1898, %v1998
  %2000 = vmatmul.bf16.gmra.mxu0 %v1928
  %v2001 = vpop.f32.mrf.mxu0
  %v2002 = vadd.f32 %v1901, %v2001
  %v2003 = vpop.f32.mrf.mxu0
  %v2004 = vadd.f32 %v1903, %v2003
  %2005 = vmatmul.bf16.gmra.mxu0 %v1929
  %v2006 = vpop.f32.mrf.mxu0
  %v2007 = vadd.f32 %v1906, %v2006
  %v2008 = vpop.f32.mrf.mxu0
  %v2009 = vadd.f32 %v1908, %v2008
  %2010 = vdwg.mxu0
  %s2011 = scalar_lea.vmem %s17, 128
  %v2012 = vld [vmem:[%s2011] sm:$0xf]
  %v2013 = vld [vmem:[%s2011 + $0x4] sm:$0xf]
  %v2014 = vld [vmem:[%s2011 + $0x8] sm:$0xf]
  %v2015 = vld [vmem:[%s2011 + $0xc] sm:$0xf]
  %v2016 = vld [vmem:[%s2011 + $0x10] sm:$0xf]
  %v2017 = vld [vmem:[%s2011 + $0x14] sm:$0xf]
  %v2018 = vld [vmem:[%s2011 + $0x18] sm:$0xf]
  %v2019 = vld [vmem:[%s2011 + $0x1c] sm:$0xf]
  %v2020 = vld [vmem:[%s2011 + $0x20] sm:$0xf]
  %v2021 = vld [vmem:[%s2011 + $0x24] sm:$0xf]
  %v2022 = vld [vmem:[%s2011 + $0x28] sm:$0xf]
  %v2023 = vld [vmem:[%s2011 + $0x2c] sm:$0xf]
  %v2024 = vld [vmem:[%s2011 + $0x30] sm:$0xf]
  %v2025 = vld [vmem:[%s2011 + $0x34] sm:$0xf]
  %v2026 = vld [vmem:[%s2011 + $0x38] sm:$0xf]
  %v2027 = vld [vmem:[%s2011 + $0x3c] sm:$0xf]
  %v2036 = vunpack.c.l.b16 %v1760
  %v2037 = vunpack.c.l.b16 %v1761
  %v2038 = vunpack.c.l.b16 %v1762
  %v2039 = vunpack.c.l.b16 %v1763
  %v2040 = vunpack.c.l.b16 %v1764
  %v2041 = vunpack.c.l.b16 %v1765
  %v2042 = vunpack.c.l.b16 %v1766
  %v2043 = vunpack.c.l.b16 %v1767
  %v2044 = vpack.c.b16 %v2037, %v2036
  %v2045 = vpack.c.b16 %v2039, %v2038
  %v2046 = vpack.c.b16 %v2041, %v2040
  %v2047 = vpack.c.b16 %v2043, %v2042
  %v2068 = vunpack.c.l.b16 %v2012
  %v2069 = vunpack.c.l.b16 %v2013
  %v2070 = vunpack.c.l.b16 %v2014
  %v2071 = vunpack.c.l.b16 %v2015
  %v2072 = vunpack.c.l.b16 %v2016
  %v2073 = vunpack.c.l.b16 %v2017
  %v2074 = vunpack.c.l.b16 %v2018
  %v2075 = vunpack.c.l.b16 %v2019
  %v2076 = vunpack.c.l.b16 %v2020
  %v2077 = vunpack.c.l.b16 %v2021
  %v2078 = vunpack.c.l.b16 %v2022
  %v2079 = vunpack.c.l.b16 %v2023
  %v2080 = vunpack.c.l.b16 %v2024
  %v2081 = vunpack.c.l.b16 %v2025
  %v2082 = vunpack.c.l.b16 %v2026
  %v2083 = vunpack.c.l.b16 %v2027
  %v2084 = vpack.c.b16 %v2069, %v2068
  %v2085 = vpack.c.b16 %v2071, %v2070
  %v2086 = vpack.c.b16 %v2073, %v2072
  %v2087 = vpack.c.b16 %v2075, %v2074
  %v2088 = vpack.c.b16 %v2077, %v2076
  %v2089 = vpack.c.b16 %v2079, %v2078
  %v2090 = vpack.c.b16 %v2081, %v2080
  %v2091 = vpack.c.b16 %v2083, %v2082
  %2100 = vmatpush.bf16.msra.mxu0 %v2091
  %2101 = vmatpush.bf16.msra.mxu0 %v2090
  %2102 = vmatpush.bf16.msra.mxu0 %v2089
  %2103 = vmatpush.bf16.msra.mxu0 %v2088
  %2104 = vmatpush.bf16.msra.mxu0 %v2087
  %2105 = vmatpush.bf16.msra.mxu0 %v2086
  %2106 = vmatpush.bf16.msra.mxu0 %v2085
  %2107 = vmatpush.bf16.msra.mxu0 %v2084
  %2108 = vmatmul.bf16.gmra.mxu0 %v2044
  %v2109 = vpop.f32.mrf.mxu0
  %v2110 = vadd.f32 0.0, %v2109
  %v2111 = vpop.f32.mrf.mxu0
  %v2112 = vadd.f32 0.0, %v2111
  %2113 = vmatmul.bf16.gmra.mxu0 %v2045
  %v2114 = vpop.f32.mrf.mxu0
  %v2115 = vadd.f32 0.0, %v2114
  %v2116 = vpop.f32.mrf.mxu0
  %v2117 = vadd.f32 0.0, %v2116
  %2118 = vmatmul.bf16.gmra.mxu0 %v2046
  %v2119 = vpop.f32.mrf.mxu0
  %v2120 = vadd.f32 0.0, %v2119
  %v2121 = vpop.f32.mrf.mxu0
  %v2122 = vadd.f32 0.0, %v2121
  %2123 = vmatmul.bf16.gmra.mxu0 %v2047
  %v2124 = vpop.f32.mrf.mxu0
  %v2125 = vadd.f32 0.0, %v2124
  %v2126 = vpop.f32.mrf.mxu0
  %v2127 = vadd.f32 0.0, %v2126
  %2128 = vdwg.mxu0
  %v2129 = vadd.f32 %v1992, %v2110
  %v2130 = vadd.f32 %v1994, %v2112
  %v2131 = vadd.f32 %v1997, %v2115
  %v2132 = vadd.f32 %v1999, %v2117
  %v2133 = vadd.f32 %v2002, %v2120
  %v2134 = vadd.f32 %v2004, %v2122
  %v2135 = vadd.f32 %v2007, %v2125
  %v2136 = vadd.f32 %v2009, %v2127
  %s2137 = scalar_lea.vmem %s17, 192
  %v2138 = vld [vmem:[%s2137] sm:$0xf]
  %v2139 = vld [vmem:[%s2137 + $0x4] sm:$0xf]
  %v2140 = vld [vmem:[%s2137 + $0x8] sm:$0xf]
  %v2141 = vld [vmem:[%s2137 + $0xc] sm:$0xf]
  %v2142 = vld [vmem:[%s2137 + $0x10] sm:$0xf]
  %v2143 = vld [vmem:[%s2137 + $0x14] sm:$0xf]
  %v2144 = vld [vmem:[%s2137 + $0x18] sm:$0xf]
  %v2145 = vld [vmem:[%s2137 + $0x1c] sm:$0xf]
  %v2146 = vld [vmem:[%s2137 + $0x20] sm:$0xf]
  %v2147 = vld [vmem:[%s2137 + $0x24] sm:$0xf]
  %v2148 = vld [vmem:[%s2137 + $0x28] sm:$0xf]
  %v2149 = vld [vmem:[%s2137 + $0x2c] sm:$0xf]
  %v2150 = vld [vmem:[%s2137 + $0x30] sm:$0xf]
  %v2151 = vld [vmem:[%s2137 + $0x34] sm:$0xf]
  %v2152 = vld [vmem:[%s2137 + $0x38] sm:$0xf]
  %v2153 = vld [vmem:[%s2137 + $0x3c] sm:$0xf]
  %v2162 = vunpack.c.l.b16 %v1768
  %v2163 = vunpack.c.l.b16 %v1769
  %v2164 = vunpack.c.l.b16 %v1770
  %v2165 = vunpack.c.l.b16 %v1771
  %v2166 = vunpack.c.l.b16 %v1772
  %v2167 = vunpack.c.l.b16 %v1773
  %v2168 = vunpack.c.l.b16 %v1774
  %v2169 = vunpack.c.l.b16 %v1775
  %v2170 = vpack.c.b16 %v2163, %v2162
  %v2171 = vpack.c.b16 %v2165, %v2164
  %v2172 = vpack.c.b16 %v2167, %v2166
  %v2173 = vpack.c.b16 %v2169, %v2168
  %v2194 = vunpack.c.l.b16 %v2138
  %v2195 = vunpack.c.l.b16 %v2139
  %v2196 = vunpack.c.l.b16 %v2140
  %v2197 = vunpack.c.l.b16 %v2141
  %v2198 = vunpack.c.l.b16 %v2142
  %v2199 = vunpack.c.l.b16 %v2143
  %v2200 = vunpack.c.l.b16 %v2144
  %v2201 = vunpack.c.l.b16 %v2145
  %v2202 = vunpack.c.l.b16 %v2146
  %v2203 = vunpack.c.l.b16 %v2147
  %v2204 = vunpack.c.l.b16 %v2148
  %v2205 = vunpack.c.l.b16 %v2149
  %v2206 = vunpack.c.l.b16 %v2150
  %v2207 = vunpack.c.l.b16 %v2151
  %v2208 = vunpack.c.l.b16 %v2152
  %v2209 = vunpack.c.l.b16 %v2153
  %v2210 = vpack.c.b16 %v2195, %v2194
  %v2211 = vpack.c.b16 %v2197, %v2196
  %v2212 = vpack.c.b16 %v2199, %v2198
  %v2213 = vpack.c.b16 %v2201, %v2200
  %v2214 = vpack.c.b16 %v2203, %v2202
  %v2215 = vpack.c.b16 %v2205, %v2204
  %v2216 = vpack.c.b16 %v2207, %v2206
  %v2217 = vpack.c.b16 %v2209, %v2208
  %2226 = vmatpush.bf16.msra.mxu0 %v2217
  %2227 = vmatpush.bf16.msra.mxu0 %v2216
  %2228 = vmatpush.bf16.msra.mxu0 %v2215
  %2229 = vmatpush.bf16.msra.mxu0 %v2214
  %2230 = vmatpush.bf16.msra.mxu0 %v2213
  %2231 = vmatpush.bf16.msra.mxu0 %v2212
  %2232 = vmatpush.bf16.msra.mxu0 %v2211
  %2233 = vmatpush.bf16.msra.mxu0 %v2210
  %2234 = vmatmul.bf16.gmra.mxu0 %v2170
  %v2235 = vpop.f32.mrf.mxu0
  %v2236 = vadd.f32 0.0, %v2235
  %v2237 = vpop.f32.mrf.mxu0
  %v2238 = vadd.f32 0.0, %v2237
  %2239 = vmatmul.bf16.gmra.mxu0 %v2171
  %v2240 = vpop.f32.mrf.mxu0
  %v2241 = vadd.f32 0.0, %v2240
  %v2242 = vpop.f32.mrf.mxu0
  %v2243 = vadd.f32 0.0, %v2242
  %2244 = vmatmul.bf16.gmra.mxu0 %v2172
  %v2245 = vpop.f32.mrf.mxu0
  %v2246 = vadd.f32 0.0, %v2245
  %v2247 = vpop.f32.mrf.mxu0
  %v2248 = vadd.f32 0.0, %v2247
  %2249 = vmatmul.bf16.gmra.mxu0 %v2173
  %v2250 = vpop.f32.mrf.mxu0
  %v2251 = vadd.f32 0.0, %v2250
  %v2252 = vpop.f32.mrf.mxu0
  %v2253 = vadd.f32 0.0, %v2252
  %2254 = vdwg.mxu0
  %v2255 = vadd.f32 %v2129, %v2236
  %v2256 = vadd.f32 %v2130, %v2238
  %v2257 = vadd.f32 %v2131, %v2241
  %v2258 = vadd.f32 %v2132, %v2243
  %v2259 = vadd.f32 %v2133, %v2246
  %v2260 = vadd.f32 %v2134, %v2248
  %v2261 = vadd.f32 %v2135, %v2251
  %v2262 = vadd.f32 %v2136, %v2253
  %v2263 = vld [vmem:[%s18] sm:$0x1]
  %v2265 = vperm.slane %v2263, 0
  %v2267 = vadd.f32 %v2255, %v2265
  %v2268 = vadd.f32 %v2256, %v2265
  %v2269 = vadd.f32 %v2257, %v2265
  %v2270 = vadd.f32 %v2258, %v2265
  %v2271 = vadd.f32 %v2259, %v2265
  %v2272 = vadd.f32 %v2260, %v2265
  %v2273 = vadd.f32 %v2261, %v2265
  %v2274 = vadd.f32 %v2262, %v2265
  %v2275 = vtanh.pop %v2267
  %v2276 = vtanh.pop %v2268
  %v2277 = vtanh.pop %v2269
  %v2278 = vtanh.pop %v2270
  %v2279 = vtanh.pop %v2271
  %v2280 = vtanh.pop %v2272
  %v2281 = vtanh.pop %v2273
  %v2282 = vtanh.pop %v2274
  %2283 = vst [vmem:[%s19] sm:$0xff] %v2275
  %2284 = vst [vmem:[%s19 + $0x8] sm:$0xff] %v2276
  %2285 = vst [vmem:[%s19 + $0x10] sm:$0xff] %v2277
  %2286 = vst [vmem:[%s19 + $0x18] sm:$0xff] %v2278
  %2287 = vst [vmem:[%s19 + $0x20] sm:$0xff] %v2279
  %2288 = vst [vmem:[%s19 + $0x28] sm:$0xff] %v2280
  %2289 = vst [vmem:[%s19 + $0x30] sm:$0xff] %v2281
  %2290 = vst [vmem:[%s19 + $0x38] sm:$0xff] %v2282
  // Predicated region
  $region78: #{generator_forward.1} parent=0 // pred_check
    _
  $region79: #{generator_forward.1} parent=0 // pred_check_branch
    %2292 = sbr.rel (0) target = $region81
  $region80: #{generator_forward.1} parent=0 // pred_region
    _
  $region81: #{generator_forward.1} parent=0 // pred_fallthru
    _
  // Predicated region
  $region82: #{generator_forward.1} parent=0 // pred_check
    _
  $region83: #{generator_forward.1} parent=0 // pred_check_branch
    %2294 = sbr.rel (0) target = $region85
  $region84: #{generator_forward.1} parent=0 // pred_region
    _
  $region85: #{generator_forward.1} parent=0 // pred_fallthru
    _

</llo_original>
